<compile_context>
chip_gen: v7x
topology: tpu7x:2x2x1
jax: 0.10.0
libtpu: 0.0.40
codegen_flags: <defaults>
</compile_context>

<pallas_src>
import functools

import jax
import jax.numpy as jnp
from jax import lax
from jax.experimental import pallas as pl
from jax.experimental.pallas import tpu as pltpu


def _resblock_kernel(x_ref, w1_ref, b1_ref, w2_ref, b2_ref, o_ref):
    """One batch block (TB images) per grid step; all slabs lane-dense (last dim W*C).

    x_ref  : (TB, H, W*C)       f32 input block (unpadded; padding done in vregs)
    w1_ref : (K*W*C, W*C)       conv1 banded weights, bf16
    b1_ref : (1, W*C)           conv1 bias tiled over W, f32
    w2_ref : (K*W*C, W*C)       conv2 banded weights, bf16
    b2_ref : (1, W*C)           conv2 bias tiled over W, f32
    o_ref  : (TB, H, W*C)       f32 output block
    """
    TB, H, WC = o_ref.shape
    KWC = w1_ref.shape[0]
    K = KWC // WC
    p = K // 2

    x_f32 = x_ref[...]                               # residual kept in f32
    x_bf = x_f32.astype(jnp.bfloat16)                # MXU operand

    zrows = jnp.zeros((TB, p, WC), jnp.bfloat16)

    def banded_lhs(slab_bf):
        # Row-pad in vregs ("same" padding along H), then lane-concatenate the
        # K row-shifted taps -> one deep-contraction LHS (TB*H, K*W*C).
        padded = jnp.concatenate([zrows, slab_bf, zrows], axis=1)      # (TB, H+2p, WC)
        taps = [padded[:, kh:kh + H, :] for kh in range(K)]
        return jnp.concatenate(taps, axis=-1).reshape(TB * H, K * WC)  # H % 8 == 0 -> layout-free

    # ---- conv1: one MXU dot, f32 accumulate; bias + ReLU on VPU in f32.
    y1 = jnp.dot(banded_lhs(x_bf), w1_ref[...],
                 preferred_element_type=jnp.float32)                   # (TB*H, WC)
    act = jnp.maximum(y1 + b1_ref[...], 0.0)

    # ---- conv2: one MXU dot; bias + residual in f32; lane-dense store.
    act_bf = act.astype(jnp.bfloat16).reshape(TB, H, WC)
    y2 = jnp.dot(banded_lhs(act_bf), w2_ref[...],
                 preferred_element_type=jnp.float32)                   # (TB*H, WC)
    res = (y2 + b2_ref[...]).reshape(TB, H, WC) + x_f32
    o_ref[...] = res.astype(o_ref.dtype)


def _banded_weights(w_oihw, W, kernel_size):
    """Fold the kw taps + channel contraction of a 2-D conv into per-kh banded
    matrices.

    Returns (K, W*Cin, W*Cout) with
        banded[kh, x*Cin + ci, w*Cout + co] = w[co, ci, kh, x - w + p]
    whenever 0 <= x - w + p < K, else 0 ("same" padding along W is implicit
    because x only ranges over [0, W)).
    """
    K = kernel_size
    p = K // 2
    Cout, Cin = w_oihw.shape[0], w_oihw.shape[1]
    wk = jnp.transpose(w_oihw, (2, 3, 1, 0))            # (kh, kw, ci, co)
    xs = jnp.arange(W).reshape(1, W, 1)
    ws = jnp.arange(W).reshape(1, 1, W)
    ks = jnp.arange(K).reshape(K, 1, 1)
    sel = (xs == ws + ks - p).astype(wk.dtype)           # (kw, x, w)
    banded = jnp.einsum("kxw,hkcd->hxcwd", sel, wk)      # (kh, x, ci, w, co)
    return banded.reshape(K, W * Cin, W * Cout)


@functools.partial(jax.jit, static_argnames=("kernel_size", "batch_block"))
def resblock_pallas(x_nchw, w1_oihw, b1, w2_oihw, b2, *, kernel_size=3,
                    batch_block=8):
    """x_nchw: (N, C, H, W) float32.  Returns (N, C, H, W)."""
    N, C, H, W = x_nchw.shape
    K = kernel_size
    WC = W * C

    TB = min(batch_block, N)                  # batch images per grid step
    Np = ((N + TB - 1) // TB) * TB            # pad batch to a multiple of TB

    # NCHW -> NHWC, flatten (W, C) into the lane dim.  No HBM pad along H:
    # "same" padding is done in-kernel (rows) / in the banded weights (cols).
    x_nhwc = jnp.transpose(x_nchw, (0, 2, 3, 1))
    x2d = x_nhwc.reshape(N, H, WC)
    if Np != N:
        x2d = jnp.pad(x2d, ((0, Np - N), (0, 0), (0, 0)))

    # Banded weights (bf16 MXU operands) and W-tiled biases (f32 VPU).
    w1b = _banded_weights(w1_oihw, W, K).reshape(K * WC, WC).astype(jnp.bfloat16)
    w2b = _banded_weights(w2_oihw, W, K).reshape(K * WC, WC).astype(jnp.bfloat16)
    b1w = jnp.tile(b1, W).reshape(1, WC).astype(jnp.float32)
    b2w = jnp.tile(b2, W).reshape(1, WC).astype(jnp.float32)

    flops = 2 * 2 * (Np * H) * (K * WC) * WC            # 2 convs, one dot each
    bytes_accessed = (4 * Np * H * WC * 2               # x in + out
                      + 2 * 2 * K * WC * WC             # bf16 banded weights
                      + 4 * 2 * WC)                     # biases
    cost = pl.CostEstimate(flops=flops, transcendentals=0,
                           bytes_accessed=bytes_accessed)

    out2d = pl.pallas_call(
        _resblock_kernel,
        out_shape=jax.ShapeDtypeStruct((Np, H, WC), x_nchw.dtype),
        grid=(Np // TB,),
        in_specs=[
            pl.BlockSpec((TB, H, WC), lambda n: (n, 0, 0)),
            pl.BlockSpec((K * WC, WC), lambda n: (0, 0)),   # grid-invariant
            pl.BlockSpec((1, WC), lambda n: (0, 0)),
            pl.BlockSpec((K * WC, WC), lambda n: (0, 0)),
            pl.BlockSpec((1, WC), lambda n: (0, 0)),
        ],
        out_specs=pl.BlockSpec((TB, H, WC), lambda n: (n, 0, 0)),
        compiler_params=pltpu.CompilerParams(
            dimension_semantics=("parallel",),
            vmem_limit_bytes=32 * 1024 * 1024),
        cost_estimate=cost,
    )(x2d, w1b, b1w, w2b, b2w)

    out2d = out2d[:N]
    return jnp.transpose(out2d.reshape(N, H, W, C), (0, 3, 1, 2))


def _reference_resblock(x_nchw, w1_oihw, b1, w2_oihw, b2):
    """Pure-JAX f32 reference matching the PyTorch ResBlock forward."""
    def conv(x, w, b):
        y = lax.conv_general_dilated(
            x, w, window_strides=(1, 1), padding="SAME",
            dimension_numbers=("NCHW", "OIHW", "NCHW"))
        return y + b.reshape(1, -1, 1, 1)

    r = conv(x_nchw, w1_oihw, b1)
    r = jnp.maximum(r, 0.0)
    r = conv(r, w2_oihw, b2)
    return r + x_nchw


if __name__ == "__main__":
    # Small shapes consistent with the module: n_feats=8, kernel_size=3.
    # W * C = 128 -> exactly one lane-width per spatial row; TB=8 gives
    # MXU M = TB*H = 128 and a multi-step "parallel" grid.
    N, C, H, W, K = 16, 8, 16, 16, 3

    key = jax.random.PRNGKey(0)
    kx, kw1, kb1, kw2, kb2 = jax.random.split(key, 5)

    x = jax.random.normal(kx, (N, C, H, W), dtype=jnp.float32)
    # PyTorch Conv2d layout: weights OIHW, bias (O,)
    w1 = jax.random.normal(kw1, (C, C, K, K), dtype=jnp.float32) * 0.1
    b1 = jax.random.normal(kb1, (C,), dtype=jnp.float32) * 0.1
    w2 = jax.random.normal(kw2, (C, C, K, K), dtype=jnp.float32) * 0.1
    b2 = jax.random.normal(kb2, (C,), dtype=jnp.float32) * 0.1

    out = resblock_pallas(x, w1, b1, w2, b2, kernel_size=K, batch_block=8)
    out = jax.block_until_ready(out)

    ref = _reference_resblock(x, w1, b1, w2, b2)
    assert out.shape == (N, C, H, W)
    # Tolerance loosened vs. the pure-f32 version because the conv path uses
    # bf16 MXU operands (accumulation, bias, ReLU and residual stay f32).
    assert jnp.allclose(out, ref, rtol=5e-2, atol=5e-2), (
        float(jnp.max(jnp.abs(out - ref))))

    print("KERNEL_OK")
</pallas_src>

<mosaic_0001>
module attributes {stable_mosaic.version = 11 : i64} {
  func.func @_resblock_kernel(%arg0: i32, %arg1: memref<8x16x128xf32, #tpu.memory_space<vmem>>, %arg2: memref<384x128xbf16, #tpu.memory_space<vmem>>, %arg3: memref<1x128xf32, #tpu.memory_space<vmem>>, %arg4: memref<384x128xbf16, #tpu.memory_space<vmem>>, %arg5: memref<1x128xf32, #tpu.memory_space<vmem>>, %arg6: memref<8x16x128xf32, #tpu.memory_space<vmem>>) attributes {dimension_semantics = [#tpu.dimension_semantics<parallel>], iteration_bounds = array<i64: 2>, scalar_prefetch = 0 : i64, scratch_operands = 0 : i64, tpu.core_type = #tpu.core_type<tc>, window_params = [{transform_indices = @transform_0, window_bounds = array<i64: 8, 16, 128>}, {pipeline_mode = #tpu.pipeline_mode<synchronous>, transform_indices = @transform_1, window_bounds = array<i64: 384, 128>}, {pipeline_mode = #tpu.pipeline_mode<synchronous>, transform_indices = @transform_2, window_bounds = array<i64: 1, 128>}, {pipeline_mode = #tpu.pipeline_mode<synchronous>, transform_indices = @transform_3, window_bounds = array<i64: 384, 128>}, {pipeline_mode = #tpu.pipeline_mode<synchronous>, transform_indices = @transform_4, window_bounds = array<i64: 1, 128>}, {transform_indices = @transform_5, window_bounds = array<i64: 8, 16, 128>}]} {
    %c0 = arith.constant 0 : index
    %c0_0 = arith.constant 0 : index
    %c0_1 = arith.constant 0 : index
    %0 = vector.load %arg1[%c0, %c0_0, %c0_1] : memref<8x16x128xf32, #tpu.memory_space<vmem>>, vector<8x16x128xf32>
    %1 = arith.truncf %0 : vector<8x16x128xf32> to vector<8x16x128xbf16>
    %cst = arith.constant 0.000000e+00 : bf16
    %2 = vector.broadcast %cst : bf16 to vector<8x1x128xbf16>
    %3 = tpu.concatenate %2, %1, %2 in 1 : vector<8x1x128xbf16>, vector<8x16x128xbf16>, vector<8x1x128xbf16> -> vector<8x18x128xbf16>
    %4 = vector.extract_strided_slice %3 {offsets = [0, 0, 0], sizes = [8, 16, 128], strides = [1, 1, 1]} : vector<8x18x128xbf16> to vector<8x16x128xbf16>
    %5 = vector.extract_strided_slice %3 {offsets = [0, 1, 0], sizes = [8, 16, 128], strides = [1, 1, 1]} : vector<8x18x128xbf16> to vector<8x16x128xbf16>
    %6 = vector.extract_strided_slice %3 {offsets = [0, 2, 0], sizes = [8, 16, 128], strides = [1, 1, 1]} : vector<8x18x128xbf16> to vector<8x16x128xbf16>
    %7 = tpu.concatenate %4, %5, %6 in 2 : vector<8x16x128xbf16>, vector<8x16x128xbf16>, vector<8x16x128xbf16> -> vector<8x16x384xbf16>
    %8 = vector.shape_cast %7 : vector<8x16x384xbf16> to vector<128x384xbf16>
    %c0_2 = arith.constant 0 : index
    %c0_3 = arith.constant 0 : index
    %9 = vector.load %arg2[%c0_2, %c0_3] : memref<384x128xbf16, #tpu.memory_space<vmem>>, vector<384x128xbf16>
    %cst_4 = arith.constant dense<0.000000e+00> : vector<128x128xf32>
    %10 = tpu.matmul %8, %9, %cst_4 {dimension_numbers = #tpu.dot_dimension_numbers<[1], [0], [0], [1], [0, 0, 1, 1], [], []>} : vector<128x384xbf16>, vector<384x128xbf16>, vector<128x128xf32> -> vector<128x128xf32>
    %c0_5 = arith.constant 0 : index
    %c0_6 = arith.constant 0 : index
    %11 = vector.load %arg3[%c0_5, %c0_6] : memref<1x128xf32, #tpu.memory_space<vmem>>, vector<1x128xf32>
    %12 = vector.broadcast %11 : vector<1x128xf32> to vector<128x128xf32>
    %13 = arith.addf %10, %12 : vector<128x128xf32>
    %cst_7 = arith.constant 0.000000e+00 : f32
    %14 = vector.broadcast %cst_7 : f32 to vector<128x128xf32>
    %15 = arith.maximumf %13, %14 : vector<128x128xf32>
    %16 = arith.truncf %15 : vector<128x128xf32> to vector<128x128xbf16>
    %17 = vector.shape_cast %16 : vector<128x128xbf16> to vector<8x16x128xbf16>
    %18 = tpu.concatenate %2, %17, %2 in 1 : vector<8x1x128xbf16>, vector<8x16x128xbf16>, vector<8x1x128xbf16> -> vector<8x18x128xbf16>
    %19 = vector.extract_strided_slice %18 {offsets = [0, 0, 0], sizes = [8, 16, 128], strides = [1, 1, 1]} : vector<8x18x128xbf16> to vector<8x16x128xbf16>
    %20 = vector.extract_strided_slice %18 {offsets = [0, 1, 0], sizes = [8, 16, 128], strides = [1, 1, 1]} : vector<8x18x128xbf16> to vector<8x16x128xbf16>
    %21 = vector.extract_strided_slice %18 {offsets = [0, 2, 0], sizes = [8, 16, 128], strides = [1, 1, 1]} : vector<8x18x128xbf16> to vector<8x16x128xbf16>
    %22 = tpu.concatenate %19, %20, %21 in 2 : vector<8x16x128xbf16>, vector<8x16x128xbf16>, vector<8x16x128xbf16> -> vector<8x16x384xbf16>
    %23 = vector.shape_cast %22 : vector<8x16x384xbf16> to vector<128x384xbf16>
    %c0_8 = arith.constant 0 : index
    %c0_9 = arith.constant 0 : index
    %24 = vector.load %arg4[%c0_8, %c0_9] : memref<384x128xbf16, #tpu.memory_space<vmem>>, vector<384x128xbf16>
    %cst_10 = arith.constant dense<0.000000e+00> : vector<128x128xf32>
    %25 = tpu.matmul %23, %24, %cst_10 {dimension_numbers = #tpu.dot_dimension_numbers<[1], [0], [0], [1], [0, 0, 1, 1], [], []>} : vector<128x384xbf16>, vector<384x128xbf16>, vector<128x128xf32> -> vector<128x128xf32>
    %c0_11 = arith.constant 0 : index
    %c0_12 = arith.constant 0 : index
    %26 = vector.load %arg5[%c0_11, %c0_12] : memref<1x128xf32, #tpu.memory_space<vmem>>, vector<1x128xf32>
    %27 = vector.broadcast %26 : vector<1x128xf32> to vector<128x128xf32>
    %28 = arith.addf %25, %27 : vector<128x128xf32>
    %29 = vector.shape_cast %28 : vector<128x128xf32> to vector<8x16x128xf32>
    %30 = arith.addf %29, %0 : vector<8x16x128xf32>
    %c0_13 = arith.constant 0 : index
    %c0_14 = arith.constant 0 : index
    %c0_15 = arith.constant 0 : index
    %31 = vector.load %arg6[%c0_13, %c0_14, %c0_15] : memref<8x16x128xf32, #tpu.memory_space<vmem>>, vector<8x16x128xf32>
    tpu.vector_store %arg6[%c0_13, %c0_14, %c0_15], %30 {strides = array<i32>} : memref<8x16x128xf32, #tpu.memory_space<vmem>>, vector<8x16x128xf32>,
    return
  }
  func.func @transform_0(%arg0: i32) -> (i32, i32, i32) {
    %c0_i32 = arith.constant 0 : i32
    %c0_i32_0 = arith.constant 0 : i32
    %c0_i32_1 = arith.constant 0 : i32
    return %arg0, %c0_i32, %c0_i32_0 : i32, i32, i32
  }
  func.func @transform_1(%arg0: i32) -> (i32, i32) {
    %c0_i32 = arith.constant 0 : i32
    %c0_i32_0 = arith.constant 0 : i32
    %c0_i32_1 = arith.constant 0 : i32
    return %c0_i32, %c0_i32_0 : i32, i32
  }
  func.func @transform_2(%arg0: i32) -> (i32, i32) {
    %c0_i32 = arith.constant 0 : i32
    %c0_i32_0 = arith.constant 0 : i32
    %c0_i32_1 = arith.constant 0 : i32
    return %c0_i32, %c0_i32_0 : i32, i32
  }
  func.func @transform_3(%arg0: i32) -> (i32, i32) {
    %c0_i32 = arith.constant 0 : i32
    %c0_i32_0 = arith.constant 0 : i32
    %c0_i32_1 = arith.constant 0 : i32
    return %c0_i32, %c0_i32_0 : i32, i32
  }
  func.func @transform_4(%arg0: i32) -> (i32, i32) {
    %c0_i32 = arith.constant 0 : i32
    %c0_i32_0 = arith.constant 0 : i32
    %c0_i32_1 = arith.constant 0 : i32
    return %c0_i32, %c0_i32_0 : i32, i32
  }
  func.func @transform_5(%arg0: i32) -> (i32, i32, i32) {
    %c0_i32 = arith.constant 0 : i32
    %c0_i32_0 = arith.constant 0 : i32
    %c0_i32_1 = arith.constant 0 : i32
    return %arg0, %c0_i32, %c0_i32_0 : i32, i32, i32
  }
}

</mosaic_0001>

<llo_original>
// kernel: tile.13
$region0: #{tile.13}
  #allocation0 [shape = 's32[1]{0}', space=sflag, size = 0x4, scoped, tag = 'scoped memory for tile.13']
  %s0 = inlined_call_operand.vmem [shape: f32[8], index: 0, kind: input, shape index: {}]
  %s1 = inlined_call_operand.vmem [shape: f32[16,8], index: 1, kind: output, shape index: {}]
  // Predicated region
  $region2: #{tile.13} parent=0 // pred_check
    _
  $region3: #{tile.13} parent=0 // pred_check_branch
    %3 = sbr.rel (0) target = $region5
  $region4: #{tile.13} parent=0 // pred_region
    _
  $region5: #{tile.13} parent=0 // pred_fallthru
    _
  %v4 = vld [vmem:[%s0] ss:$0 sm:$0xff]
  %5 = vst [vmem:[%s1] sm:$0xff] %v4
  %s6 = scalar_lea.vmem %s1, 8
  %7 = vst [vmem:[%s6] sm:$0xff] %v4

// kernel: tile.14
$region0: #{tile.14}
  %s0 = inlined_call_operand.vmem [shape: f32[16,8], index: 0, kind: input, shape index: {}]
  %s1 = inlined_call_operand.vmem [shape: f32[1,128], index: 1, kind: output, shape index: {}]
  $region1: #{tile.14} parent=0
    #allocation0 [shape = 'u8[4096]{0}', space=vmem, size = 0x1000, scoped, tag = 'scoped mem for output reshape']
    %v2 = vld [vmem:[%s0] sm:$0x1]
    %vm3 = vcmask 64512
    %4 = vst.msk [vmem:[#allocation0] sm:$0x1] %vm3, %v2
    %s5 = scalar_lea.vmem %s0, 15
    %v6 = vld [vmem:[%s5] sm:$0x1]
    %7 = vrot.lane.b32.xlu0 %v6, 120
    %v8 = vpop.permute.xlu0 %7
    %vm9 = vcmask 1048512
    %10 = vst.msk [vmem:[#allocation0] sm:$0x1] %vm9, %v8
    %s11 = scalar_lea.vmem %s0, 14
    %v12 = vld [vmem:[%s11] sm:$0x1]
    %13 = vrot.lane.b32.xlu0 %v12, 112
    %v14 = vpop.permute.xlu0 %13
    %vm15 = vcmask 982912
    %16 = vst.msk [vmem:[#allocation0] sm:$0x1] %vm15, %v14
    %s17 = scalar_lea.vmem %s0, 13
    %v18 = vld [vmem:[%s17] sm:$0x1]
    %19 = vrot.lane.b32.xlu0 %v18, 104
    %v20 = vpop.permute.xlu0 %19
    %vm21 = vcmask 917312
    %22 = vst.msk [vmem:[#allocation0] sm:$0x1] %vm21, %v20
    %s23 = scalar_lea.vmem %s0, 12
    %v24 = vld [vmem:[%s23] sm:$0x1]
    %25 = vrot.lane.b32.xlu0 %v24, 96
    %v26 = vpop.permute.xlu0 %25
    %vm27 = vcmask 851712
    %28 = vst.msk [vmem:[#allocation0] sm:$0x1] %vm27, %v26
    %s29 = scalar_lea.vmem %s0, 11
    %v30 = vld [vmem:[%s29] sm:$0x1]
    %31 = vrot.lane.b32.xlu0 %v30, 88
    %v32 = vpop.permute.xlu0 %31
    %vm33 = vcmask 786112
    %34 = vst.msk [vmem:[#allocation0] sm:$0x1] %vm33, %v32
    %s35 = scalar_lea.vmem %s0, 10
    %v36 = vld [vmem:[%s35] sm:$0x1]
    %37 = vrot.lane.b32.xlu0 %v36, 80
    %v38 = vpop.permute.xlu0 %37
    %vm39 = vcmask 720512
    %40 = vst.msk [vmem:[#allocation0] sm:$0x1] %vm39, %v38
    %s41 = scalar_lea.vmem %s0, 9
    %v42 = vld [vmem:[%s41] sm:$0x1]
    %43 = vrot.lane.b32.xlu0 %v42, 72
    %v44 = vpop.permute.xlu0 %43
    %vm45 = vcmask 654912
    %46 = vst.msk [vmem:[#allocation0] sm:$0x1] %vm45, %v44
    %s47 = scalar_lea.vmem %s0, 8
    %v48 = vld [vmem:[%s47] sm:$0x1]
    %49 = vrot.lane.b32.xlu0 %v48, 64
    %v50 = vpop.permute.xlu0 %49
    %vm51 = vcmask 589312
    %52 = vst.msk [vmem:[#allocation0] sm:$0x1] %vm51, %v50
    %s53 = scalar_lea.vmem %s0, 7
    %v54 = vld [vmem:[%s53] sm:$0x1]
    %55 = vrot.lane.b32.xlu0 %v54, 56
    %v56 = vpop.permute.xlu0 %55
    %vm57 = vcmask 523712
    %58 = vst.msk [vmem:[#allocation0] sm:$0x1] %vm57, %v56
    %s59 = scalar_lea.vmem %s0, 6
    %v60 = vld [vmem:[%s59] sm:$0x1]
    %61 = vrot.lane.b32.xlu0 %v60, 48
    %v62 = vpop.permute.xlu0 %61
    %vm63 = vcmask 458112
    %64 = vst.msk [vmem:[#allocation0] sm:$0x1] %vm63, %v62
    %s65 = scalar_lea.vmem %s0, 5
    %v66 = vld [vmem:[%s65] sm:$0x1]
    %67 = vrot.lane.b32.xlu0 %v66, 40
    %v68 = vpop.permute.xlu0 %67
    %vm69 = vcmask 392512
    %70 = vst.msk [vmem:[#allocation0] sm:$0x1] %vm69, %v68
    %s71 = scalar_lea.vmem %s0, 4
    %v72 = vld [vmem:[%s71] sm:$0x1]
    %73 = vrot.lane.b32.xlu0 %v72, 32
    %v74 = vpop.permute.xlu0 %73
    %vm75 = vcmask 326912
    %76 = vst.msk [vmem:[#allocation0] sm:$0x1] %vm75, %v74
    %s77 = scalar_lea.vmem %s0, 3
    %v78 = vld [vmem:[%s77] sm:$0x1]
    %79 = vrot.lane.b32.xlu0 %v78, 24
    %v80 = vpop.permute.xlu0 %79
    %vm81 = vcmask 261312
    %82 = vst.msk [vmem:[#allocation0] sm:$0x1] %vm81, %v80
    %s83 = scalar_lea.vmem %s0, 2
    %v84 = vld [vmem:[%s83] sm:$0x1]
    %85 = vrot.lane.b32.xlu0 %v84, 16
    %v86 = vpop.permute.xlu0 %85
    %vm87 = vcmask 195712
    %88 = vst.msk [vmem:[#allocation0] sm:$0x1] %vm87, %v86
    %s89 = scalar_lea.vmem %s0, 1
    %v90 = vld [vmem:[%s89] sm:$0x1]
    %91 = vrot.lane.b32.xlu0 %v90, 8
    %v92 = vpop.permute.xlu0 %91
    %vm93 = vcmask 130112
    %94 = vst.msk [vmem:[#allocation0] sm:$0x1] %vm93, %v92
    %s96 = sshllo.u32 0, 1
    %v98 = vld [vmem:[#allocation0] sm:%s96]
    %s99 = sshllo.u32 0, 1
    %100 = vst [vmem:[%s1] sm:%s99] %v98

// kernel: resblock_pallas.1
$region0: #{resblock_pallas.1}
  #allocation0 [shape = 'u32[]', space=smem, size = 0x4, offset = 0x4, fixed_abs, tag = 'smem constant byte address 0x4 - core index']
  #allocation1 [shape = 'u32[144,128]{1,0:T(1,128)}', space=vmem, size = 0x12000, scoped, tag = 'internal scratch']
  %s0 = inlined_call_operand.vmem [shape: f32[16,16,128], index: 0, kind: input, shape index: {}]
  %s1 = inlined_call_operand.vmem [shape: bf16[384,128], index: 1, kind: input, shape index: {}]
  %s2 = inlined_call_operand.vmem [shape: f32[1,128], index: 2, kind: input, shape index: {}]
  %s3 = inlined_call_operand.vmem [shape: bf16[384,128], index: 3, kind: input, shape index: {}]
  %s4 = inlined_call_operand.vmem [shape: f32[1,128], index: 4, kind: input, shape index: {}]
  %s5 = inlined_call_operand.vmem [shape: f32[16,16,128], index: 5, kind: output, shape index: {}]
  %s6 = sld [smem:[#allocation0]]
  $region53: #{resblock_pallas.1} parent=0
    _
  %s8 = ssub.s32 1, %s6
  %s9 = scalar_select 0, %s8, %s6
  loop: start=0, step=1, limit=4
  $region2: #{resblock_pallas.1} parent=0 // loop_pre_header
    _
  $region3: #{resblock_pallas.1} parent=0 // loop_header
    %s11 = sphi 0, %s15
    %p12 = scmp.ge.s32.totalorder %s11, 4
    %s21 = sphi 0, %s23
    %s24 = sphi 0, %s21
    %s25 = sphi 0, %s24
    %s41 = sphi 0, %s25
    %s45 = sphi 0, %s45
    %s47 = sphi 0, %s45
    %s48 = sphi 0, %s47
    %s62 = sphi 0, %s48
    %s66 = sphi 0, %s66
    %s68 = sphi 0, %s66
    %s69 = sphi 0, %s68
    %s83 = sphi 0, %s69
    %s87 = sphi 0, %s87
    %s89 = sphi 0, %s87
    %s90 = sphi 0, %s89
    %s104 = sphi 0, %s90
    %s108 = sphi 0, %s108
    %s110 = sphi 0, %s108
    %s111 = sphi 0, %s110
    %s125 = sphi 0, %s111
    %s131 = sphi 0, %s133
    %s134 = sphi 0, %s131
    %s135 = sphi 0, %s134
    %s151 = sphi 0, %s135
  $region4: #{resblock_pallas.1} parent=0 // loop_header_branch
    %14 = sbr.rel (%p12) target = $region8
  $region5: #{resblock_pallas.1} parent=0 // loop_body
    %s16 = ssub.s32 %s11, 1
    %s17 = ssub.s32 %s11, 2
    %s18 = sadd.s32 %s11, 1
    %s19 = ssub.s32 %s11, %s18
    %p20 = scmp.eq.s32.totalorder %s19, 0
    %s22 = sadd.s32 %s21, 1
    %s23 = scalar_select %p20, %s21, %s22
    %p26 = pneg %p20
    %p27 = scmp.eq.s32.totalorder %s11, 1
    %p28 = por %p26, %p27
    %p29 = scmp.ne.s32.totalorder %s21, %s24
    %p30 = scmp.eq.s32.totalorder %s11, 0
    %p31 = por %p29, %p30
    %p32 = scmp.ne.s32.totalorder %s21, %s24
    %p33 = scmp.eq.s32.totalorder %s16, 1
    %p34 = por %p32, %p33
    %p35 = scmp.ne.s32.totalorder %s24, %s25
    %p36 = scmp.eq.s32.totalorder %s16, 0
    %p37 = por %p35, %p36
    %p38 = scmp.ne.s32.totalorder %s24, %s25
    %p39 = scmp.eq.s32.totalorder %s17, 1
    %p40 = por %p38, %p39
    %p42 = scmp.ne.s32.totalorder %s25, %s41
    %p43 = scmp.eq.s32.totalorder %s17, 0
    %p44 = por %p42, %p43
    %s46 = sadd.s32 %s45, 1
    %p49 = scmp.eq.s32.totalorder %s11, 1
    %p50 = scmp.ne.s32.totalorder %s45, %s47
    %p51 = scmp.eq.s32.totalorder %s11, 0
    %p52 = por %p50, %p51
    %p53 = scmp.ne.s32.totalorder %s45, %s47
    %p54 = scmp.eq.s32.totalorder %s16, 1
    %p55 = por %p53, %p54
    %p56 = scmp.ne.s32.totalorder %s47, %s48
    %p57 = scmp.eq.s32.totalorder %s16, 0
    %p58 = por %p56, %p57
    %p59 = scmp.ne.s32.totalorder %s47, %s48
    %p60 = scmp.eq.s32.totalorder %s17, 1
    %p61 = por %p59, %p60
    %p63 = scmp.ne.s32.totalorder %s48, %s62
    %p64 = scmp.eq.s32.totalorder %s17, 0
    %p65 = por %p63, %p64
    %s67 = sadd.s32 %s66, 1
    %p70 = scmp.eq.s32.totalorder %s11, 1
    %p71 = scmp.ne.s32.totalorder %s66, %s68
    %p72 = scmp.eq.s32.totalorder %s11, 0
    %p73 = por %p71, %p72
    %p74 = scmp.ne.s32.totalorder %s66, %s68
    %p75 = scmp.eq.s32.totalorder %s16, 1
    %p76 = por %p74, %p75
    %p77 = scmp.ne.s32.totalorder %s68, %s69
    %p78 = scmp.eq.s32.totalorder %s16, 0
    %p79 = por %p77, %p78
    %p80 = scmp.ne.s32.totalorder %s68, %s69
    %p81 = scmp.eq.s32.totalorder %s17, 1
    %p82 = por %p80, %p81
    %p84 = scmp.ne.s32.totalorder %s69, %s83
    %p85 = scmp.eq.s32.totalorder %s17, 0
    %p86 = por %p84, %p85
    %s88 = sadd.s32 %s87, 1
    %p91 = scmp.eq.s32.totalorder %s11, 1
    %p92 = scmp.ne.s32.totalorder %s87, %s89
    %p93 = scmp.eq.s32.totalorder %s11, 0
    %p94 = por %p92, %p93
    %p95 = scmp.ne.s32.totalorder %s87, %s89
    %p96 = scmp.eq.s32.totalorder %s16, 1
    %p97 = por %p95, %p96
    %p98 = scmp.ne.s32.totalorder %s89, %s90
    %p99 = scmp.eq.s32.totalorder %s16, 0
    %p100 = por %p98, %p99
    %p101 = scmp.ne.s32.totalorder %s89, %s90
    %p102 = scmp.eq.s32.totalorder %s17, 1
    %p103 = por %p101, %p102
    %p105 = scmp.ne.s32.totalorder %s90, %s104
    %p106 = scmp.eq.s32.totalorder %s17, 0
    %p107 = por %p105, %p106
    %s109 = sadd.s32 %s108, 1
    %p112 = scmp.eq.s32.totalorder %s11, 1
    %p113 = scmp.ne.s32.totalorder %s108, %s110
    %p114 = scmp.eq.s32.totalorder %s11, 0
    %p115 = por %p113, %p114
    %p116 = scmp.ne.s32.totalorder %s108, %s110
    %p117 = scmp.eq.s32.totalorder %s16, 1
    %p118 = por %p116, %p117
    %p119 = scmp.ne.s32.totalorder %s110, %s111
    %p120 = scmp.eq.s32.totalorder %s16, 0
    %p121 = por %p119, %p120
    %p122 = scmp.ne.s32.totalorder %s110, %s111
    %p123 = scmp.eq.s32.totalorder %s17, 1
    %p124 = por %p122, %p123
    %p126 = scmp.ne.s32.totalorder %s111, %s125
    %p127 = scmp.eq.s32.totalorder %s17, 0
    %p128 = por %p126, %p127
    %s129 = ssub.s32 %s11, %s18
    %p130 = scmp.eq.s32.totalorder %s129, 0
    %s132 = sadd.s32 %s131, 1
    %s133 = scalar_select %p130, %s131, %s132
    %p136 = pneg %p130
    %p137 = scmp.eq.s32.totalorder %s11, 1
    %p138 = por %p136, %p137
    %p139 = scmp.ne.s32.totalorder %s131, %s134
    %p140 = scmp.eq.s32.totalorder %s11, 0
    %p141 = por %p139, %p140
    %p142 = scmp.ne.s32.totalorder %s131, %s134
    %p143 = scmp.eq.s32.totalorder %s16, 1
    %p144 = por %p142, %p143
    %p145 = scmp.ne.s32.totalorder %s134, %s135
    %p146 = scmp.eq.s32.totalorder %s16, 0
    %p147 = por %p145, %p146
    %p148 = scmp.ne.s32.totalorder %s134, %s135
    %p149 = scmp.eq.s32.totalorder %s17, 1
    %p150 = por %p148, %p149
    %p152 = scmp.ne.s32.totalorder %s135, %s151
    %p153 = scmp.eq.s32.totalorder %s17, 0
    %p154 = por %p152, %p153
    %p155 = scmp.le.s32.totalorder 1, %s11
    %p156 = scmp.lt.s32.totalorder %s11, 3
    %p157 = pnand %p155, %p156
    %p158 = pneg %p157
    // Predicated region
    $region9: #{resblock_pallas.1} parent=5 // pred_check
      _
    $region10: #{resblock_pallas.1} parent=5 // pred_check_branch
      %160 = sbr.rel (%p157) target = $region12
    $region11: #{resblock_pallas.1} parent=5 // pred_region
      %s161 = ssub.s32 %s11, 1
      // Predicated region
      $region13: #{resblock_pallas.1} parent=11 // pred_check
        %p162 = pneg %p58
      $region14: #{resblock_pallas.1} parent=11 // pred_check_branch
        %164 = sbr.rel (%p162) target = $region16
      $region15: #{resblock_pallas.1} parent=11 // pred_region
        _
      $region16: #{resblock_pallas.1} parent=11 // pred_fallthru
        _
      // Predicated region
      $region17: #{resblock_pallas.1} parent=11 // pred_check
        %p165 = pneg %p79
      $region18: #{resblock_pallas.1} parent=11 // pred_check_branch
        %167 = sbr.rel (%p165) target = $region20
      $region19: #{resblock_pallas.1} parent=11 // pred_region
        _
      $region20: #{resblock_pallas.1} parent=11 // pred_fallthru
        _
      // Predicated region
      $region21: #{resblock_pallas.1} parent=11 // pred_check
        %p168 = pneg %p100
      $region22: #{resblock_pallas.1} parent=11 // pred_check_branch
        %170 = sbr.rel (%p168) target = $region24
      $region23: #{resblock_pallas.1} parent=11 // pred_region
        _
      $region24: #{resblock_pallas.1} parent=11 // pred_fallthru
        _
      // Predicated region
      $region25: #{resblock_pallas.1} parent=11 // pred_check
        %p171 = pneg %p121
      $region26: #{resblock_pallas.1} parent=11 // pred_check_branch
        %173 = sbr.rel (%p171) target = $region28
      $region27: #{resblock_pallas.1} parent=11 // pred_region
        _
      $region28: #{resblock_pallas.1} parent=11 // pred_fallthru
        _
    $region12: #{resblock_pallas.1} parent=5 // pred_fallthru
      _
    %p174 = scmp.lt.s32.totalorder %s11, 2
    // Predicated region
    $region29: #{resblock_pallas.1} parent=5 // pred_check
      %p175 = pneg %p174
    $region30: #{resblock_pallas.1} parent=5 // pred_check_branch
      %177 = sbr.rel (%p175) target = $region32
    $region31: #{resblock_pallas.1} parent=5 // pred_region
      // Predicated region
      $region33: #{resblock_pallas.1} parent=31 // pred_check
        %p178 = pneg %p31
      $region34: #{resblock_pallas.1} parent=31 // pred_check_branch
        %180 = sbr.rel (%p178) target = $region36
      $region35: #{resblock_pallas.1} parent=31 // pred_region
        %s181 = smul.u32 8, %s11
        %p182 = scmp.lt.s32.totalorder %s181, 15
        %s183 = scalar_select %p182, %s181, 15
        %s184 = smul.addr %s183, 2
        %s185 = smul.addr %s184, 8
        %s186 = scalar_lea.vmem %s0, %s185
        %s187 = smul.u32 8, %s11
      $region36: #{resblock_pallas.1} parent=31 // pred_fallthru
        _
    $region32: #{resblock_pallas.1} parent=5 // pred_fallthru
      _
    %p188 = scmp.le.s32.totalorder 1, %s11
    %p189 = scmp.lt.s32.totalorder %s11, 3
    %p190 = pnand %p188, %p189
    %p191 = pneg %p190
    // Predicated region
    $region37: #{resblock_pallas.1} parent=5 // pred_check
      _
    $region38: #{resblock_pallas.1} parent=5 // pred_check_branch
      %193 = sbr.rel (%p190) target = $region40
    $region39: #{resblock_pallas.1} parent=5 // pred_region
      %s194 = ssub.s32 %s11, 1
      %s195 = smul.u32 8, %s16
      %p196 = scmp.lt.s32.totalorder %s195, 15
      %s197 = scalar_select %p196, %s195, 15
      %s198 = smul.addr %s197, 2
      %s199 = smul.addr %s198, 8
      %s200 = scalar_lea.vmem %s0, %s199
      %p201 = pneg %p37
      %p202 = pneg %p34
      %p203 = pneg %p58
      %p204 = pneg %p55
      %p205 = pneg %p79
      %p206 = pneg %p76
      %p207 = pneg %p100
      %p208 = pneg %p97
      %p209 = pneg %p121
      %p210 = pneg %p118
      %p211 = pneg %p147
      %p212 = pneg %p144
      %s213 = smul.u32 8, %s16
      %p214 = scmp.lt.s32.totalorder %s213, 15
      %s215 = scalar_select %p214, %s213, 15
      %s216 = smul.addr %s215, 2
      %s217 = smul.addr %s216, 8
      %s218 = scalar_lea.vmem %s5, %s217
      %s219 = smul.u32 8, %s16
      %p220 = scmp.lt.s32.totalorder %s219, 15
      %s221 = scalar_select %p220, %s219, 15
      %s222 = smul.addr %s221, 2
      %s223 = smul.addr %s222, 8
      %s224 = scalar_lea.vmem %s0, %s223
      %s225 = smul.u32 8, %s16
      %s226 = smul.u32 8, %s16
      %p227 = scmp.lt.s32.totalorder %s226, 15
      %s228 = scalar_select %p227, %s226, 15
      %s229 = smul.addr %s228, 2
      %s230 = smul.addr %s229, 8
      %s231 = scalar_lea.vmem %s5, %s230
      %s232 = smul.u32 8, %s16
      %v234 = vld [vmem:[%s224] sm:$0xff]
      %v235 = vld [vmem:[%s224 + $0x8] sm:$0xff]
      %v236 = vld [vmem:[%s224 + $0x10] sm:$0xff]
      %v237 = vld [vmem:[%s224 + $0x18] sm:$0xff]
      %v238 = vld [vmem:[%s224 + $0x20] sm:$0xff]
      %v239 = vld [vmem:[%s224 + $0x28] sm:$0xff]
      %v240 = vld [vmem:[%s224 + $0x30] sm:$0xff]
      %v241 = vld [vmem:[%s224 + $0x38] sm:$0xff]
      %v242 = vld [vmem:[%s224 + $0x40] sm:$0xff]
      %v243 = vld [vmem:[%s224 + $0x48] sm:$0xff]
      %v244 = vld [vmem:[%s224 + $0x50] sm:$0xff]
      %v245 = vld [vmem:[%s224 + $0x58] sm:$0xff]
      %v246 = vld [vmem:[%s224 + $0x60] sm:$0xff]
      %v247 = vld [vmem:[%s224 + $0x68] sm:$0xff]
      %v248 = vld [vmem:[%s224 + $0x70] sm:$0xff]
      %v249 = vld [vmem:[%s224 + $0x78] sm:$0xff]
      %v250 = vpack.c.bf16 %v235, %v234
      %v251 = vpack.c.bf16 %v237, %v236
      %v252 = vpack.c.bf16 %v239, %v238
      %v253 = vpack.c.bf16 %v241, %v240
      %v254 = vpack.c.bf16 %v243, %v242
      %v255 = vpack.c.bf16 %v245, %v244
      %v256 = vpack.c.bf16 %v247, %v246
      %v257 = vpack.c.bf16 %v249, %v248
      %v259 = vshrl.u32 %v250, 16
      %v261 = vrot.slane %v259, 7
      %v262 = vshll.u32 %v250, 16
      %v264 = vor.u32 %v261, %v262
      %v266 = vshrl.u32 %v251, 16
      %v268 = vrot.slane %v266, 7
      %v269 = vshll.u32 %v251, 16
      %v271 = vor.u32 %v268, %v269
      %v273 = vshrl.u32 %v252, 16
      %v275 = vrot.slane %v273, 7
      %v276 = vshll.u32 %v252, 16
      %v278 = vor.u32 %v275, %v276
      %v280 = vshrl.u32 %v253, 16
      %v282 = vrot.slane %v280, 7
      %v283 = vshll.u32 %v253, 16
      %v285 = vor.u32 %v282, %v283
      %v287 = vshrl.u32 %v254, 16
      %v289 = vrot.slane %v287, 7
      %v290 = vshll.u32 %v254, 16
      %v292 = vor.u32 %v289, %v290
      %v294 = vshrl.u32 %v255, 16
      %v296 = vrot.slane %v294, 7
      %v297 = vshll.u32 %v255, 16
      %v299 = vor.u32 %v296, %v297
      %v301 = vshrl.u32 %v256, 16
      %v303 = vrot.slane %v301, 7
      %v304 = vshll.u32 %v256, 16
      %v306 = vor.u32 %v303, %v304
      %v308 = vshrl.u32 %v257, 16
      %v310 = vrot.slane %v308, 7
      %v311 = vshll.u32 %v257, 16
      %v313 = vor.u32 %v310, %v311
      %vm330 = vcmask 1040384
      %vm331 = vsmask.f32 256
      %vm332 = vmand %vm330, %vm331
      %v333 = vsel %vm332, 0, %v264
      %v334 = vsel %vm332, 0, %v271
      %v335 = vsel %vm332, 0, %v278
      %v336 = vsel %vm332, 0, %v285
      %v337 = vsel %vm332, 0, %v292
      %v338 = vsel %vm332, 0, %v299
      %v339 = vsel %vm332, 0, %v306
      %v340 = vsel %vm332, 0, %v313
      %v341 = vsel %vm332, %v261, 0
      %v342 = vsel %vm332, %v268, 0
      %v343 = vsel %vm332, %v275, 0
      %v344 = vsel %vm332, %v282, 0
      %v345 = vsel %vm332, %v289, 0
      %v346 = vsel %vm332, %v296, 0
      %v347 = vsel %vm332, %v303, 0
      %v348 = vsel %vm332, %v310, 0
      %vm349 = vsmask.f32 7424
      %v351 = vshrl.u32 %v333, 16
      %v353 = vshll.u32 %v333, 16
      %v355 = vrot.slane %v353, 1
      %v356 = vor.u32 %v351, %v355
      %v358 = vshll.u32 %v341, 16
      %v360 = vrot.slane %v358, 1
      %v361 = vsel %vm349, %v356, %v360
      %v363 = vshrl.u32 %v334, 16
      %v365 = vshll.u32 %v334, 16
      %v367 = vrot.slane %v365, 1
      %v368 = vor.u32 %v363, %v367
      %v370 = vshll.u32 %v342, 16
      %v372 = vrot.slane %v370, 1
      %v373 = vsel %vm349, %v368, %v372
      %v375 = vshrl.u32 %v335, 16
      %v377 = vshll.u32 %v335, 16
      %v379 = vrot.slane %v377, 1
      %v380 = vor.u32 %v375, %v379
      %v382 = vshll.u32 %v343, 16
      %v384 = vrot.slane %v382, 1
      %v385 = vsel %vm349, %v380, %v384
      %v387 = vshrl.u32 %v336, 16
      %v389 = vshll.u32 %v336, 16
      %v391 = vrot.slane %v389, 1
      %v392 = vor.u32 %v387, %v391
      %v394 = vshll.u32 %v344, 16
      %v396 = vrot.slane %v394, 1
      %v397 = vsel %vm349, %v392, %v396
      %v399 = vshrl.u32 %v337, 16
      %v401 = vshll.u32 %v337, 16
      %v403 = vrot.slane %v401, 1
      %v404 = vor.u32 %v399, %v403
      %v406 = vshll.u32 %v345, 16
      %v408 = vrot.slane %v406, 1
      %v409 = vsel %vm349, %v404, %v408
      %v411 = vshrl.u32 %v338, 16
      %v413 = vshll.u32 %v338, 16
      %v415 = vrot.slane %v413, 1
      %v416 = vor.u32 %v411, %v415
      %v418 = vshll.u32 %v346, 16
      %v420 = vrot.slane %v418, 1
      %v421 = vsel %vm349, %v416, %v420
      %v423 = vshrl.u32 %v339, 16
      %v425 = vshll.u32 %v339, 16
      %v427 = vrot.slane %v425, 1
      %v428 = vor.u32 %v423, %v427
      %v430 = vshll.u32 %v347, 16
      %v432 = vrot.slane %v430, 1
      %v433 = vsel %vm349, %v428, %v432
      %v435 = vshrl.u32 %v340, 16
      %v437 = vshll.u32 %v340, 16
      %v439 = vrot.slane %v437, 1
      %v440 = vor.u32 %v435, %v439
      %v442 = vshll.u32 %v348, 16
      %v444 = vrot.slane %v442, 1
      %v445 = vsel %vm349, %v440, %v444
      %vm470 = vcmask 1046528
      %v471 = vrot.slane %v333, 1
      %v472 = vrot.slane %v341, 1
      %v473 = vsel %vm470, %v471, %v472
      %v474 = vrot.slane %v334, 1
      %v475 = vrot.slane %v342, 1
      %v476 = vsel %vm470, %v474, %v475
      %v477 = vrot.slane %v335, 1
      %v478 = vrot.slane %v343, 1
      %v479 = vsel %vm470, %v477, %v478
      %v480 = vrot.slane %v336, 1
      %v481 = vrot.slane %v344, 1
      %v482 = vsel %vm470, %v480, %v481
      %v483 = vrot.slane %v337, 1
      %v484 = vrot.slane %v345, 1
      %v485 = vsel %vm470, %v483, %v484
      %v486 = vrot.slane %v338, 1
      %v487 = vrot.slane %v346, 1
      %v488 = vsel %vm470, %v486, %v487
      %v489 = vrot.slane %v339, 1
      %v490 = vrot.slane %v347, 1
      %v491 = vsel %vm470, %v489, %v490
      %v492 = vrot.slane %v340, 1
      %v493 = vrot.slane %v348, 1
      %v494 = vsel %vm470, %v492, %v493
      %v503 = vld [vmem:[%s1] sm:$0xf]
      %v504 = vld [vmem:[%s1 + $0x4] sm:$0xf]
      %v505 = vld [vmem:[%s1 + $0x8] sm:$0xf]
      %v506 = vld [vmem:[%s1 + $0xc] sm:$0xf]
      %v507 = vld [vmem:[%s1 + $0x10] sm:$0xf]
      %v508 = vld [vmem:[%s1 + $0x14] sm:$0xf]
      %v509 = vld [vmem:[%s1 + $0x18] sm:$0xf]
      %v510 = vld [vmem:[%s1 + $0x1c] sm:$0xf]
      %v511 = vld [vmem:[%s1 + $0x20] sm:$0xf]
      %v512 = vld [vmem:[%s1 + $0x24] sm:$0xf]
      %v513 = vld [vmem:[%s1 + $0x28] sm:$0xf]
      %v514 = vld [vmem:[%s1 + $0x2c] sm:$0xf]
      %v515 = vld [vmem:[%s1 + $0x30] sm:$0xf]
      %v516 = vld [vmem:[%s1 + $0x34] sm:$0xf]
      %v517 = vld [vmem:[%s1 + $0x38] sm:$0xf]
      %v518 = vld [vmem:[%s1 + $0x3c] sm:$0xf]
      %v519 = vld [vmem:[%s1 + $0x40] sm:$0xf]
      %v520 = vld [vmem:[%s1 + $0x44] sm:$0xf]
      %v521 = vld [vmem:[%s1 + $0x48] sm:$0xf]
      %v522 = vld [vmem:[%s1 + $0x4c] sm:$0xf]
      %v523 = vld [vmem:[%s1 + $0x50] sm:$0xf]
      %v524 = vld [vmem:[%s1 + $0x54] sm:$0xf]
      %v525 = vld [vmem:[%s1 + $0x58] sm:$0xf]
      %v526 = vld [vmem:[%s1 + $0x5c] sm:$0xf]
      %v527 = vld [vmem:[%s1 + $0x60] sm:$0xf]
      %v528 = vld [vmem:[%s1 + $0x64] sm:$0xf]
      %v529 = vld [vmem:[%s1 + $0x68] sm:$0xf]
      %v530 = vld [vmem:[%s1 + $0x6c] sm:$0xf]
      %v531 = vld [vmem:[%s1 + $0x70] sm:$0xf]
      %v532 = vld [vmem:[%s1 + $0x74] sm:$0xf]
      %v533 = vld [vmem:[%s1 + $0x78] sm:$0xf]
      %v534 = vld [vmem:[%s1 + $0x7c] sm:$0xf]
      %v535 = vld [vmem:[%s1 + $0x80] sm:$0xf]
      %v536 = vld [vmem:[%s1 + $0x84] sm:$0xf]
      %v537 = vld [vmem:[%s1 + $0x88] sm:$0xf]
      %v538 = vld [vmem:[%s1 + $0x8c] sm:$0xf]
      %v539 = vld [vmem:[%s1 + $0x90] sm:$0xf]
      %v540 = vld [vmem:[%s1 + $0x94] sm:$0xf]
      %v541 = vld [vmem:[%s1 + $0x98] sm:$0xf]
      %v542 = vld [vmem:[%s1 + $0x9c] sm:$0xf]
      %v543 = vld [vmem:[%s1 + $0xa0] sm:$0xf]
      %v544 = vld [vmem:[%s1 + $0xa4] sm:$0xf]
      %v545 = vld [vmem:[%s1 + $0xa8] sm:$0xf]
      %v546 = vld [vmem:[%s1 + $0xac] sm:$0xf]
      %v547 = vld [vmem:[%s1 + $0xb0] sm:$0xf]
      %v548 = vld [vmem:[%s1 + $0xb4] sm:$0xf]
      %v549 = vld [vmem:[%s1 + $0xb8] sm:$0xf]
      %v550 = vld [vmem:[%s1 + $0xbc] sm:$0xf]
      %v551 = vld [vmem:[%s2] sm:$0x1]
      %v553 = vlaneseq
      %v554 = vshrl.u32 %v553, 7
      %v555 = vsub.s32 0, %v554
      %v556 = vrot.slane %v551, %v555
      %v606 = vunpack.c.l.b16 %v503
      %v607 = vunpack.c.l.b16 %v504
      %v608 = vunpack.c.l.b16 %v505
      %v609 = vunpack.c.l.b16 %v506
      %v610 = vunpack.c.l.b16 %v507
      %v611 = vunpack.c.l.b16 %v508
      %v612 = vunpack.c.l.b16 %v509
      %v613 = vunpack.c.l.b16 %v510
      %v614 = vunpack.c.l.b16 %v511
      %v615 = vunpack.c.l.b16 %v512
      %v616 = vunpack.c.l.b16 %v513
      %v617 = vunpack.c.l.b16 %v514
      %v618 = vunpack.c.l.b16 %v515
      %v619 = vunpack.c.l.b16 %v516
      %v620 = vunpack.c.l.b16 %v517
      %v621 = vunpack.c.l.b16 %v518
      %v622 = vunpack.c.l.b16 %v519
      %v623 = vunpack.c.l.b16 %v520
      %v624 = vunpack.c.l.b16 %v521
      %v625 = vunpack.c.l.b16 %v522
      %v626 = vunpack.c.l.b16 %v523
      %v627 = vunpack.c.l.b16 %v524
      %v628 = vunpack.c.l.b16 %v525
      %v629 = vunpack.c.l.b16 %v526
      %v630 = vunpack.c.l.b16 %v527
      %v631 = vunpack.c.l.b16 %v528
      %v632 = vunpack.c.l.b16 %v529
      %v633 = vunpack.c.l.b16 %v530
      %v634 = vunpack.c.l.b16 %v531
      %v635 = vunpack.c.l.b16 %v532
      %v636 = vunpack.c.l.b16 %v533
      %v637 = vunpack.c.l.b16 %v534
      %v638 = vunpack.c.l.b16 %v535
      %v639 = vunpack.c.l.b16 %v536
      %v640 = vunpack.c.l.b16 %v537
      %v641 = vunpack.c.l.b16 %v538
      %v642 = vunpack.c.l.b16 %v539
      %v643 = vunpack.c.l.b16 %v540
      %v644 = vunpack.c.l.b16 %v541
      %v645 = vunpack.c.l.b16 %v542
      %v646 = vunpack.c.l.b16 %v543
      %v647 = vunpack.c.l.b16 %v544
      %v648 = vunpack.c.l.b16 %v545
      %v649 = vunpack.c.l.b16 %v546
      %v650 = vunpack.c.l.b16 %v547
      %v651 = vunpack.c.l.b16 %v548
      %v652 = vunpack.c.l.b16 %v549
      %v653 = vunpack.c.l.b16 %v550
      %v654 = vpack.c.b16 %v607, %v606
      %v655 = vpack.c.b16 %v609, %v608
      %v656 = vpack.c.b16 %v611, %v610
      %v657 = vpack.c.b16 %v613, %v612
      %v658 = vpack.c.b16 %v615, %v614
      %v659 = vpack.c.b16 %v617, %v616
      %v660 = vpack.c.b16 %v619, %v618
      %v661 = vpack.c.b16 %v621, %v620
      %v662 = vpack.c.b16 %v623, %v622
      %v663 = vpack.c.b16 %v625, %v624
      %v664 = vpack.c.b16 %v627, %v626
      %v665 = vpack.c.b16 %v629, %v628
      %v666 = vpack.c.b16 %v631, %v630
      %v667 = vpack.c.b16 %v633, %v632
      %v668 = vpack.c.b16 %v635, %v634
      %v669 = vpack.c.b16 %v637, %v636
      %v670 = vpack.c.b16 %v639, %v638
      %v671 = vpack.c.b16 %v641, %v640
      %v672 = vpack.c.b16 %v643, %v642
      %v673 = vpack.c.b16 %v645, %v644
      %v674 = vpack.c.b16 %v647, %v646
      %v675 = vpack.c.b16 %v649, %v648
      %v676 = vpack.c.b16 %v651, %v650
      %v677 = vpack.c.b16 %v653, %v652
      %702 = vmatprep.subr.bf16.mxu0 0
      %703 = vmatpush1.bf16.msra.mxu0 %v654
      %704 = vmatprep.subr.bf16.mxu0 0
      %705 = vmatpush1.bf16.msra.mxu0 %v655
      %706 = vmatprep.subr.bf16.mxu0 0
      %707 = vmatpush1.bf16.msra.mxu0 %v656
      %708 = vmatprep.subr.bf16.mxu0 0
      %709 = vmatpush1.bf16.msra.mxu0 %v657
      %710 = vmatprep.subr.bf16.mxu0 0
      %711 = vmatpush1.bf16.msra.mxu0 %v658
      %712 = vmatprep.subr.bf16.mxu0 0
      %713 = vmatpush1.bf16.msra.mxu0 %v659
      %714 = vmatprep.subr.bf16.mxu0 0
      %715 = vmatpush1.bf16.msra.mxu0 %v660
      %716 = vmatprep.subr.bf16.mxu0 0
      %717 = vmatpush1.bf16.msra.mxu0 %v661
      %718 = vmatprep.subr.bf16.mxu0 0
      %719 = vmatpush1.bf16.msra.mxu0 %v662
      %720 = vmatprep.subr.bf16.mxu0 0
      %721 = vmatpush1.bf16.msra.mxu0 %v663
      %722 = vmatprep.subr.bf16.mxu0 0
      %723 = vmatpush1.bf16.msra.mxu0 %v664
      %724 = vmatprep.subr.bf16.mxu0 0
      %725 = vmatpush1.bf16.msra.mxu0 %v665
      %726 = vmatprep.subr.bf16.mxu0 0
      %727 = vmatpush1.bf16.msra.mxu0 %v666
      %728 = vmatprep.subr.bf16.mxu0 0
      %729 = vmatpush1.bf16.msra.mxu0 %v667
      %730 = vmatprep.subr.bf16.mxu0 0
      %731 = vmatpush1.bf16.msra.mxu0 %v668
      %732 = vmatprep.subr.bf16.mxu0 0
      %733 = vmatpush1.bf16.msra.mxu0 %v669
      %734 = vmatprep.mubr.bf16.mxu0 %v361
      %735 = vmatmul.mubr.bf16.gmra.mrb[0].mxu0 %v333
      %v736 = vpop.f32.mrb[0].mxu0
      %v737 = vadd.f32 %v556, %v736
      %v738 = vpop.f32.mrb[0].mxu0
      %v739 = vpop.f32.mrb[0].mxu0
      %v740 = vadd.f32 %v556, %v739
      %v741 = vpop.f32.mrb[0].mxu0
      %742 = vmatprep.mubr.bf16.mxu0 %v373
      %743 = vmatmul.mubr.bf16.gmra.mrb[0].mxu0 %v334
      %v744 = vpop.f32.mrb[0].mxu0
      %v745 = vadd.f32 %v556, %v744
      %v746 = vpop.f32.mrb[0].mxu0
      %v747 = vpop.f32.mrb[0].mxu0
      %v748 = vadd.f32 %v556, %v747
      %v749 = vpop.f32.mrb[0].mxu0
      %750 = vmatprep.mubr.bf16.mxu0 %v385
      %751 = vmatmul.mubr.bf16.gmra.mrb[0].mxu0 %v335
      %v752 = vpop.f32.mrb[0].mxu0
      %v753 = vadd.f32 %v556, %v752
      %v754 = vpop.f32.mrb[0].mxu0
      %v755 = vpop.f32.mrb[0].mxu0
      %v756 = vadd.f32 %v556, %v755
      %v757 = vpop.f32.mrb[0].mxu0
      %758 = vmatprep.mubr.bf16.mxu0 %v397
      %759 = vmatmul.mubr.bf16.gmra.mrb[0].mxu0 %v336
      %v760 = vpop.f32.mrb[0].mxu0
      %v761 = vadd.f32 %v556, %v760
      %v762 = vpop.f32.mrb[0].mxu0
      %v763 = vpop.f32.mrb[0].mxu0
      %v764 = vadd.f32 %v556, %v763
      %v765 = vpop.f32.mrb[0].mxu0
      %766 = vmatprep.mubr.bf16.mxu0 %v409
      %767 = vmatmul.mubr.bf16.gmra.mrb[0].mxu0 %v337
      %v768 = vpop.f32.mrb[0].mxu0
      %v769 = vadd.f32 %v556, %v768
      %v770 = vpop.f32.mrb[0].mxu0
      %v771 = vpop.f32.mrb[0].mxu0
      %v772 = vadd.f32 %v556, %v771
      %v773 = vpop.f32.mrb[0].mxu0
      %774 = vmatprep.mubr.bf16.mxu0 %v421
      %775 = vmatmul.mubr.bf16.gmra.mrb[0].mxu0 %v338
      %v776 = vpop.f32.mrb[0].mxu0
      %v777 = vadd.f32 %v556, %v776
      %v778 = vpop.f32.mrb[0].mxu0
      %v779 = vpop.f32.mrb[0].mxu0
      %v780 = vadd.f32 %v556, %v779
      %v781 = vpop.f32.mrb[0].mxu0
      %782 = vmatprep.mubr.bf16.mxu0 %v433
      %783 = vmatmul.mubr.bf16.gmra.mrb[0].mxu0 %v339
      %v784 = vpop.f32.mrb[0].mxu0
      %v785 = vadd.f32 %v556, %v784
      %v786 = vpop.f32.mrb[0].mxu0
      %v787 = vpop.f32.mrb[0].mxu0
      %v788 = vadd.f32 %v556, %v787
      %v789 = vpop.f32.mrb[0].mxu0
      %790 = vmatprep.mubr.bf16.mxu0 %v445
      %791 = vmatmul.mubr.bf16.gmra.mrb[0].mxu0 %v340
      %v792 = vpop.f32.mrb[0].mxu0
      %v793 = vadd.f32 %v556, %v792
      %v794 = vpop.f32.mrb[0].mxu0
      %v795 = vpop.f32.mrb[0].mxu0
      %v796 = vadd.f32 %v556, %v795
      %v797 = vpop.f32.mrb[0].mxu0
      %798 = vdwg.mxu0
      %799 = vmatprep.subr.bf16.mxu0 0
      %800 = vmatpush1.bf16.msra.mxu0 %v670
      %801 = vmatprep.subr.bf16.mxu0 0
      %802 = vmatpush1.bf16.msra.mxu0 %v671
      %803 = vmatprep.subr.bf16.mxu0 0
      %804 = vmatpush1.bf16.msra.mxu0 %v672
      %805 = vmatprep.subr.bf16.mxu0 0
      %806 = vmatpush1.bf16.msra.mxu0 %v673
      %807 = vmatprep.subr.bf16.mxu0 0
      %808 = vmatpush1.bf16.msra.mxu0 %v674
      %809 = vmatprep.subr.bf16.mxu0 0
      %810 = vmatpush1.bf16.msra.mxu0 %v675
      %811 = vmatprep.subr.bf16.mxu0 0
      %812 = vmatpush1.bf16.msra.mxu0 %v676
      %813 = vmatprep.subr.bf16.mxu0 0
      %814 = vmatpush1.bf16.msra.mxu0 %v677
      %815 = vmatprep.subr.bf16.mxu0 0
      %816 = vmatpush1.bf16.msra.mxu0 0
      %817 = vmatprep.subr.bf16.mxu0 0
      %818 = vmatpush1.bf16.msra.mxu0 0
      %819 = vmatprep.subr.bf16.mxu0 0
      %820 = vmatpush1.bf16.msra.mxu0 0
      %821 = vmatprep.subr.bf16.mxu0 0
      %822 = vmatpush1.bf16.msra.mxu0 0
      %823 = vmatprep.subr.bf16.mxu0 0
      %824 = vmatpush1.bf16.msra.mxu0 0
      %825 = vmatprep.subr.bf16.mxu0 0
      %826 = vmatpush1.bf16.msra.mxu0 0
      %827 = vmatprep.subr.bf16.mxu0 0
      %828 = vmatpush1.bf16.msra.mxu0 0
      %829 = vmatprep.subr.bf16.mxu0 0
      %830 = vmatpush1.bf16.msra.mxu0 0
      %831 = vmatprep.mubr.bf16.mxu0 0
      %832 = vmatmul.mubr.bf16.gmra.mrb[0].mxu0 %v473
      %v833 = vpop.f32.mrb[0].mxu0
      %v834 = vadd.f32 %v737, %v833
      %v835 = vpop.f32.mrb[0].mxu0
      %v836 = vpop.f32.mrb[0].mxu0
      %v837 = vadd.f32 %v740, %v836
      %v838 = vpop.f32.mrb[0].mxu0
      %839 = vmatprep.mubr.bf16.mxu0 0
      %840 = vmatmul.mubr.bf16.gmra.mrb[0].mxu0 %v476
      %v841 = vpop.f32.mrb[0].mxu0
      %v842 = vadd.f32 %v745, %v841
      %v843 = vpop.f32.mrb[0].mxu0
      %v844 = vpop.f32.mrb[0].mxu0
      %v845 = vadd.f32 %v748, %v844
      %v846 = vpop.f32.mrb[0].mxu0
      %847 = vmatprep.mubr.bf16.mxu0 0
      %848 = vmatmul.mubr.bf16.gmra.mrb[0].mxu0 %v479
      %v849 = vpop.f32.mrb[0].mxu0
      %v850 = vadd.f32 %v753, %v849
      %v851 = vpop.f32.mrb[0].mxu0
      %v852 = vpop.f32.mrb[0].mxu0
      %v853 = vadd.f32 %v756, %v852
      %v854 = vpop.f32.mrb[0].mxu0
      %855 = vmatprep.mubr.bf16.mxu0 0
      %856 = vmatmul.mubr.bf16.gmra.mrb[0].mxu0 %v482
      %v857 = vpop.f32.mrb[0].mxu0
      %v858 = vadd.f32 %v761, %v857
      %v859 = vpop.f32.mrb[0].mxu0
      %v860 = vpop.f32.mrb[0].mxu0
      %v861 = vadd.f32 %v764, %v860
      %v862 = vpop.f32.mrb[0].mxu0
      %863 = vmatprep.mubr.bf16.mxu0 0
      %864 = vmatmul.mubr.bf16.gmra.mrb[0].mxu0 %v485
      %v865 = vpop.f32.mrb[0].mxu0
      %v866 = vadd.f32 %v769, %v865
      %v867 = vpop.f32.mrb[0].mxu0
      %v868 = vpop.f32.mrb[0].mxu0
      %v869 = vadd.f32 %v772, %v868
      %v870 = vpop.f32.mrb[0].mxu0
      %871 = vmatprep.mubr.bf16.mxu0 0
      %872 = vmatmul.mubr.bf16.gmra.mrb[0].mxu0 %v488
      %v873 = vpop.f32.mrb[0].mxu0
      %v874 = vadd.f32 %v777, %v873
      %v875 = vpop.f32.mrb[0].mxu0
      %v876 = vpop.f32.mrb[0].mxu0
      %v877 = vadd.f32 %v780, %v876
      %v878 = vpop.f32.mrb[0].mxu0
      %879 = vmatprep.mubr.bf16.mxu0 0
      %880 = vmatmul.mubr.bf16.gmra.mrb[0].mxu0 %v491
      %v881 = vpop.f32.mrb[0].mxu0
      %v882 = vadd.f32 %v785, %v881
      %v883 = vpop.f32.mrb[0].mxu0
      %v884 = vpop.f32.mrb[0].mxu0
      %v885 = vadd.f32 %v788, %v884
      %v886 = vpop.f32.mrb[0].mxu0
      %887 = vmatprep.mubr.bf16.mxu0 0
      %888 = vmatmul.mubr.bf16.gmra.mrb[0].mxu0 %v494
      %v889 = vpop.f32.mrb[0].mxu0
      %v890 = vadd.f32 %v793, %v889
      %v891 = vpop.f32.mrb[0].mxu0
      %v892 = vpop.f32.mrb[0].mxu0
      %v893 = vadd.f32 %v796, %v892
      %v894 = vpop.f32.mrb[0].mxu0
      %895 = vdwg.mxu0
      %v896 = vmax.f32 %v834, 0.0
      %v897 = vmax.f32 %v837, 0.0
      %v898 = vmax.f32 %v842, 0.0
      %v899 = vmax.f32 %v845, 0.0
      %v900 = vmax.f32 %v850, 0.0
      %v901 = vmax.f32 %v853, 0.0
      %v902 = vmax.f32 %v858, 0.0
      %v903 = vmax.f32 %v861, 0.0
      %v904 = vmax.f32 %v866, 0.0
      %v905 = vmax.f32 %v869, 0.0
      %v906 = vmax.f32 %v874, 0.0
      %v907 = vmax.f32 %v877, 0.0
      %v908 = vmax.f32 %v882, 0.0
      %v909 = vmax.f32 %v885, 0.0
      %v910 = vmax.f32 %v890, 0.0
      %v911 = vmax.f32 %v893, 0.0
      %v912 = vpack.c.bf16 %v897, %v896
      %v913 = vpack.c.bf16 %v899, %v898
      %v914 = vpack.c.bf16 %v901, %v900
      %v915 = vpack.c.bf16 %v903, %v902
      %v916 = vpack.c.bf16 %v905, %v904
      %v917 = vpack.c.bf16 %v907, %v906
      %v918 = vpack.c.bf16 %v909, %v908
      %v919 = vpack.c.bf16 %v911, %v910
      %v921 = vshrl.u32 %v912, 16
      %v923 = vrot.slane %v921, 7
      %v924 = vshll.u32 %v912, 16
      %v926 = vor.u32 %v923, %v924
      %v928 = vshrl.u32 %v913, 16
      %v930 = vrot.slane %v928, 7
      %v931 = vshll.u32 %v913, 16
      %v933 = vor.u32 %v930, %v931
      %v935 = vshrl.u32 %v914, 16
      %v937 = vrot.slane %v935, 7
      %v938 = vshll.u32 %v914, 16
      %v940 = vor.u32 %v937, %v938
      %v942 = vshrl.u32 %v915, 16
      %v944 = vrot.slane %v942, 7
      %v945 = vshll.u32 %v915, 16
      %v947 = vor.u32 %v944, %v945
      %v949 = vshrl.u32 %v916, 16
      %v951 = vrot.slane %v949, 7
      %v952 = vshll.u32 %v916, 16
      %v954 = vor.u32 %v951, %v952
      %v956 = vshrl.u32 %v917, 16
      %v958 = vrot.slane %v956, 7
      %v959 = vshll.u32 %v917, 16
      %v961 = vor.u32 %v958, %v959
      %v963 = vshrl.u32 %v918, 16
      %v965 = vrot.slane %v963, 7
      %v966 = vshll.u32 %v918, 16
      %v968 = vor.u32 %v965, %v966
      %v970 = vshrl.u32 %v919, 16
      %v972 = vrot.slane %v970, 7
      %v973 = vshll.u32 %v919, 16
      %v975 = vor.u32 %v972, %v973
      %v992 = vsel %vm332, 0, %v926
      %v993 = vsel %vm332, 0, %v933
      %v994 = vsel %vm332, 0, %v940
      %v995 = vsel %vm332, 0, %v947
      %v996 = vsel %vm332, 0, %v954
      %v997 = vsel %vm332, 0, %v961
      %v998 = vsel %vm332, 0, %v968
      %v999 = vsel %vm332, 0, %v975
      %v1000 = vsel %vm332, %v923, 0
      %v1001 = vsel %vm332, %v930, 0
      %v1002 = vsel %vm332, %v937, 0
      %v1003 = vsel %vm332, %v944, 0
      %v1004 = vsel %vm332, %v951, 0
      %v1005 = vsel %vm332, %v958, 0
      %v1006 = vsel %vm332, %v965, 0
      %v1007 = vsel %vm332, %v972, 0
      %v1009 = vshrl.u32 %v992, 16
      %v1011 = vshll.u32 %v992, 16
      %v1013 = vrot.slane %v1011, 1
      %v1014 = vor.u32 %v1009, %v1013
      %v1016 = vshll.u32 %v1000, 16
      %v1018 = vrot.slane %v1016, 1
      %v1019 = vsel %vm349, %v1014, %v1018
      %v1021 = vshrl.u32 %v993, 16
      %v1023 = vshll.u32 %v993, 16
      %v1025 = vrot.slane %v1023, 1
      %v1026 = vor.u32 %v1021, %v1025
      %v1028 = vshll.u32 %v1001, 16
      %v1030 = vrot.slane %v1028, 1
      %v1031 = vsel %vm349, %v1026, %v1030
      %v1033 = vshrl.u32 %v994, 16
      %v1035 = vshll.u32 %v994, 16
      %v1037 = vrot.slane %v1035, 1
      %v1038 = vor.u32 %v1033, %v1037
      %v1040 = vshll.u32 %v1002, 16
      %v1042 = vrot.slane %v1040, 1
      %v1043 = vsel %vm349, %v1038, %v1042
      %v1045 = vshrl.u32 %v995, 16
      %v1047 = vshll.u32 %v995, 16
      %v1049 = vrot.slane %v1047, 1
      %v1050 = vor.u32 %v1045, %v1049
      %v1052 = vshll.u32 %v1003, 16
      %v1054 = vrot.slane %v1052, 1
      %v1055 = vsel %vm349, %v1050, %v1054
      %v1057 = vshrl.u32 %v996, 16
      %v1059 = vshll.u32 %v996, 16
      %v1061 = vrot.slane %v1059, 1
      %v1062 = vor.u32 %v1057, %v1061
      %v1064 = vshll.u32 %v1004, 16
      %v1066 = vrot.slane %v1064, 1
      %v1067 = vsel %vm349, %v1062, %v1066
      %v1069 = vshrl.u32 %v997, 16
      %v1071 = vshll.u32 %v997, 16
      %v1073 = vrot.slane %v1071, 1
      %v1074 = vor.u32 %v1069, %v1073
      %v1076 = vshll.u32 %v1005, 16
      %v1078 = vrot.slane %v1076, 1
      %v1079 = vsel %vm349, %v1074, %v1078
      %v1081 = vshrl.u32 %v998, 16
      %v1083 = vshll.u32 %v998, 16
      %v1085 = vrot.slane %v1083, 1
      %v1086 = vor.u32 %v1081, %v1085
      %v1088 = vshll.u32 %v1006, 16
      %v1090 = vrot.slane %v1088, 1
      %v1091 = vsel %vm349, %v1086, %v1090
      %v1093 = vshrl.u32 %v999, 16
      %v1095 = vshll.u32 %v999, 16
      %v1097 = vrot.slane %v1095, 1
      %v1098 = vor.u32 %v1093, %v1097
      %v1100 = vshll.u32 %v1007, 16
      %v1102 = vrot.slane %v1100, 1
      %v1103 = vsel %vm349, %v1098, %v1102
      %v1128 = vrot.slane %v992, 1
      %v1129 = vrot.slane %v1000, 1
      %v1130 = vsel %vm470, %v1128, %v1129
      %v1131 = vrot.slane %v993, 1
      %v1132 = vrot.slane %v1001, 1
      %v1133 = vsel %vm470, %v1131, %v1132
      %v1134 = vrot.slane %v994, 1
      %v1135 = vrot.slane %v1002, 1
      %v1136 = vsel %vm470, %v1134, %v1135
      %v1137 = vrot.slane %v995, 1
      %v1138 = vrot.slane %v1003, 1
      %v1139 = vsel %vm470, %v1137, %v1138
      %v1140 = vrot.slane %v996, 1
      %v1141 = vrot.slane %v1004, 1
      %v1142 = vsel %vm470, %v1140, %v1141
      %v1143 = vrot.slane %v997, 1
      %v1144 = vrot.slane %v1005, 1
      %v1145 = vsel %vm470, %v1143, %v1144
      %v1146 = vrot.slane %v998, 1
      %v1147 = vrot.slane %v1006, 1
      %v1148 = vsel %vm470, %v1146, %v1147
      %v1149 = vrot.slane %v999, 1
      %v1150 = vrot.slane %v1007, 1
      %v1151 = vsel %vm470, %v1149, %v1150
      %v1160 = vld [vmem:[%s3] sm:$0xf]
      %v1161 = vld [vmem:[%s3 + $0x4] sm:$0xf]
      %v1162 = vld [vmem:[%s3 + $0x8] sm:$0xf]
      %v1163 = vld [vmem:[%s3 + $0xc] sm:$0xf]
      %v1164 = vld [vmem:[%s3 + $0x10] sm:$0xf]
      %v1165 = vld [vmem:[%s3 + $0x14] sm:$0xf]
      %v1166 = vld [vmem:[%s3 + $0x18] sm:$0xf]
      %v1167 = vld [vmem:[%s3 + $0x1c] sm:$0xf]
      %v1168 = vld [vmem:[%s3 + $0x20] sm:$0xf]
      %v1169 = vld [vmem:[%s3 + $0x24] sm:$0xf]
      %v1170 = vld [vmem:[%s3 + $0x28] sm:$0xf]
      %v1171 = vld [vmem:[%s3 + $0x2c] sm:$0xf]
      %v1172 = vld [vmem:[%s3 + $0x30] sm:$0xf]
      %v1173 = vld [vmem:[%s3 + $0x34] sm:$0xf]
      %v1174 = vld [vmem:[%s3 + $0x38] sm:$0xf]
      %v1175 = vld [vmem:[%s3 + $0x3c] sm:$0xf]
      %v1176 = vld [vmem:[%s3 + $0x40] sm:$0xf]
      %v1177 = vld [vmem:[%s3 + $0x44] sm:$0xf]
      %v1178 = vld [vmem:[%s3 + $0x48] sm:$0xf]
      %v1179 = vld [vmem:[%s3 + $0x4c] sm:$0xf]
      %v1180 = vld [vmem:[%s3 + $0x50] sm:$0xf]
      %v1181 = vld [vmem:[%s3 + $0x54] sm:$0xf]
      %v1182 = vld [vmem:[%s3 + $0x58] sm:$0xf]
      %v1183 = vld [vmem:[%s3 + $0x5c] sm:$0xf]
      %v1184 = vld [vmem:[%s3 + $0x60] sm:$0xf]
      %v1185 = vld [vmem:[%s3 + $0x64] sm:$0xf]
      %v1186 = vld [vmem:[%s3 + $0x68] sm:$0xf]
      %v1187 = vld [vmem:[%s3 + $0x6c] sm:$0xf]
      %v1188 = vld [vmem:[%s3 + $0x70] sm:$0xf]
      %v1189 = vld [vmem:[%s3 + $0x74] sm:$0xf]
      %v1190 = vld [vmem:[%s3 + $0x78] sm:$0xf]
      %v1191 = vld [vmem:[%s3 + $0x7c] sm:$0xf]
      %v1192 = vld [vmem:[%s3 + $0x80] sm:$0xf]
      %v1193 = vld [vmem:[%s3 + $0x84] sm:$0xf]
      %v1194 = vld [vmem:[%s3 + $0x88] sm:$0xf]
      %v1195 = vld [vmem:[%s3 + $0x8c] sm:$0xf]
      %v1196 = vld [vmem:[%s3 + $0x90] sm:$0xf]
      %v1197 = vld [vmem:[%s3 + $0x94] sm:$0xf]
      %v1198 = vld [vmem:[%s3 + $0x98] sm:$0xf]
      %v1199 = vld [vmem:[%s3 + $0x9c] sm:$0xf]
      %v1200 = vld [vmem:[%s3 + $0xa0] sm:$0xf]
      %v1201 = vld [vmem:[%s3 + $0xa4] sm:$0xf]
      %v1202 = vld [vmem:[%s3 + $0xa8] sm:$0xf]
      %v1203 = vld [vmem:[%s3 + $0xac] sm:$0xf]
      %v1204 = vld [vmem:[%s3 + $0xb0] sm:$0xf]
      %v1205 = vld [vmem:[%s3 + $0xb4] sm:$0xf]
      %v1206 = vld [vmem:[%s3 + $0xb8] sm:$0xf]
      %v1207 = vld [vmem:[%s3 + $0xbc] sm:$0xf]
      %v1208 = vld [vmem:[%s4] sm:$0x1]
      %v1210 = vlaneseq
      %v1211 = vshrl.u32 %v1210, 7
      %v1212 = vsub.s32 0, %v1211
      %v1213 = vrot.slane %v1208, %v1212
      %v1263 = vunpack.c.l.b16 %v1160
      %v1264 = vunpack.c.l.b16 %v1161
      %v1265 = vunpack.c.l.b16 %v1162
      %v1266 = vunpack.c.l.b16 %v1163
      %v1267 = vunpack.c.l.b16 %v1164
      %v1268 = vunpack.c.l.b16 %v1165
      %v1269 = vunpack.c.l.b16 %v1166
      %v1270 = vunpack.c.l.b16 %v1167
      %v1271 = vunpack.c.l.b16 %v1168
      %v1272 = vunpack.c.l.b16 %v1169
      %v1273 = vunpack.c.l.b16 %v1170
      %v1274 = vunpack.c.l.b16 %v1171
      %v1275 = vunpack.c.l.b16 %v1172
      %v1276 = vunpack.c.l.b16 %v1173
      %v1277 = vunpack.c.l.b16 %v1174
      %v1278 = vunpack.c.l.b16 %v1175
      %v1279 = vunpack.c.l.b16 %v1176
      %v1280 = vunpack.c.l.b16 %v1177
      %v1281 = vunpack.c.l.b16 %v1178
      %v1282 = vunpack.c.l.b16 %v1179
      %v1283 = vunpack.c.l.b16 %v1180
      %v1284 = vunpack.c.l.b16 %v1181
      %v1285 = vunpack.c.l.b16 %v1182
      %v1286 = vunpack.c.l.b16 %v1183
      %v1287 = vunpack.c.l.b16 %v1184
      %v1288 = vunpack.c.l.b16 %v1185
      %v1289 = vunpack.c.l.b16 %v1186
      %v1290 = vunpack.c.l.b16 %v1187
      %v1291 = vunpack.c.l.b16 %v1188
      %v1292 = vunpack.c.l.b16 %v1189
      %v1293 = vunpack.c.l.b16 %v1190
      %v1294 = vunpack.c.l.b16 %v1191
      %v1295 = vunpack.c.l.b16 %v1192
      %v1296 = vunpack.c.l.b16 %v1193
      %v1297 = vunpack.c.l.b16 %v1194
      %v1298 = vunpack.c.l.b16 %v1195
      %v1299 = vunpack.c.l.b16 %v1196
      %v1300 = vunpack.c.l.b16 %v1197
      %v1301 = vunpack.c.l.b16 %v1198
      %v1302 = vunpack.c.l.b16 %v1199
      %v1303 = vunpack.c.l.b16 %v1200
      %v1304 = vunpack.c.l.b16 %v1201
      %v1305 = vunpack.c.l.b16 %v1202
      %v1306 = vunpack.c.l.b16 %v1203
      %v1307 = vunpack.c.l.b16 %v1204
      %v1308 = vunpack.c.l.b16 %v1205
      %v1309 = vunpack.c.l.b16 %v1206
      %v1310 = vunpack.c.l.b16 %v1207
      %v1311 = vpack.c.b16 %v1264, %v1263
      %v1312 = vpack.c.b16 %v1266, %v1265
      %v1313 = vpack.c.b16 %v1268, %v1267
      %v1314 = vpack.c.b16 %v1270, %v1269
      %v1315 = vpack.c.b16 %v1272, %v1271
      %v1316 = vpack.c.b16 %v1274, %v1273
      %v1317 = vpack.c.b16 %v1276, %v1275
      %v1318 = vpack.c.b16 %v1278, %v1277
      %v1319 = vpack.c.b16 %v1280, %v1279
      %v1320 = vpack.c.b16 %v1282, %v1281
      %v1321 = vpack.c.b16 %v1284, %v1283
      %v1322 = vpack.c.b16 %v1286, %v1285
      %v1323 = vpack.c.b16 %v1288, %v1287
      %v1324 = vpack.c.b16 %v1290, %v1289
      %v1325 = vpack.c.b16 %v1292, %v1291
      %v1326 = vpack.c.b16 %v1294, %v1293
      %v1327 = vpack.c.b16 %v1296, %v1295
      %v1328 = vpack.c.b16 %v1298, %v1297
      %v1329 = vpack.c.b16 %v1300, %v1299
      %v1330 = vpack.c.b16 %v1302, %v1301
      %v1331 = vpack.c.b16 %v1304, %v1303
      %v1332 = vpack.c.b16 %v1306, %v1305
      %v1333 = vpack.c.b16 %v1308, %v1307
      %v1334 = vpack.c.b16 %v1310, %v1309
      %1359 = vmatprep.subr.bf16.mxu0 0
      %1360 = vmatpush1.bf16.msra.mxu0 %v1311
      %1361 = vmatprep.subr.bf16.mxu0 0
      %1362 = vmatpush1.bf16.msra.mxu0 %v1312
      %1363 = vmatprep.subr.bf16.mxu0 0
      %1364 = vmatpush1.bf16.msra.mxu0 %v1313
      %1365 = vmatprep.subr.bf16.mxu0 0
      %1366 = vmatpush1.bf16.msra.mxu0 %v1314
      %1367 = vmatprep.subr.bf16.mxu0 0
      %1368 = vmatpush1.bf16.msra.mxu0 %v1315
      %1369 = vmatprep.subr.bf16.mxu0 0
      %1370 = vmatpush1.bf16.msra.mxu0 %v1316
      %1371 = vmatprep.subr.bf16.mxu0 0
      %1372 = vmatpush1.bf16.msra.mxu0 %v1317
      %1373 = vmatprep.subr.bf16.mxu0 0
      %1374 = vmatpush1.bf16.msra.mxu0 %v1318
      %1375 = vmatprep.subr.bf16.mxu0 0
      %1376 = vmatpush1.bf16.msra.mxu0 %v1319
      %1377 = vmatprep.subr.bf16.mxu0 0
      %1378 = vmatpush1.bf16.msra.mxu0 %v1320
      %1379 = vmatprep.subr.bf16.mxu0 0
      %1380 = vmatpush1.bf16.msra.mxu0 %v1321
      %1381 = vmatprep.subr.bf16.mxu0 0
      %1382 = vmatpush1.bf16.msra.mxu0 %v1322
      %1383 = vmatprep.subr.bf16.mxu0 0
      %1384 = vmatpush1.bf16.msra.mxu0 %v1323
      %1385 = vmatprep.subr.bf16.mxu0 0
      %1386 = vmatpush1.bf16.msra.mxu0 %v1324
      %1387 = vmatprep.subr.bf16.mxu0 0
      %1388 = vmatpush1.bf16.msra.mxu0 %v1325
      %1389 = vmatprep.subr.bf16.mxu0 0
      %1390 = vmatpush1.bf16.msra.mxu0 %v1326
      %1391 = vmatprep.mubr.bf16.mxu0 %v1019
      %1392 = vmatmul.mubr.bf16.gmra.mrb[0].mxu0 %v992
      %v1393 = vpop.f32.mrb[0].mxu0
      %v1394 = vadd.f32 %v1213, %v1393
      %v1395 = vpop.f32.mrb[0].mxu0
      %v1396 = vpop.f32.mrb[0].mxu0
      %v1397 = vadd.f32 %v1213, %v1396
      %v1398 = vpop.f32.mrb[0].mxu0
      %1399 = vmatprep.mubr.bf16.mxu0 %v1031
      %1400 = vmatmul.mubr.bf16.gmra.mrb[0].mxu0 %v993
      %v1401 = vpop.f32.mrb[0].mxu0
      %v1402 = vadd.f32 %v1213, %v1401
      %v1403 = vpop.f32.mrb[0].mxu0
      %v1404 = vpop.f32.mrb[0].mxu0
      %v1405 = vadd.f32 %v1213, %v1404
      %v1406 = vpop.f32.mrb[0].mxu0
      %1407 = vmatprep.mubr.bf16.mxu0 %v1043
      %1408 = vmatmul.mubr.bf16.gmra.mrb[0].mxu0 %v994
      %v1409 = vpop.f32.mrb[0].mxu0
      %v1410 = vadd.f32 %v1213, %v1409
      %v1411 = vpop.f32.mrb[0].mxu0
      %v1412 = vpop.f32.mrb[0].mxu0
      %v1413 = vadd.f32 %v1213, %v1412
      %v1414 = vpop.f32.mrb[0].mxu0
      %1415 = vmatprep.mubr.bf16.mxu0 %v1055
      %1416 = vmatmul.mubr.bf16.gmra.mrb[0].mxu0 %v995
      %v1417 = vpop.f32.mrb[0].mxu0
      %v1418 = vadd.f32 %v1213, %v1417
      %v1419 = vpop.f32.mrb[0].mxu0
      %v1420 = vpop.f32.mrb[0].mxu0
      %v1421 = vadd.f32 %v1213, %v1420
      %v1422 = vpop.f32.mrb[0].mxu0
      %1423 = vmatprep.mubr.bf16.mxu0 %v1067
      %1424 = vmatmul.mubr.bf16.gmra.mrb[0].mxu0 %v996
      %v1425 = vpop.f32.mrb[0].mxu0
      %v1426 = vadd.f32 %v1213, %v1425
      %v1427 = vpop.f32.mrb[0].mxu0
      %v1428 = vpop.f32.mrb[0].mxu0
      %v1429 = vadd.f32 %v1213, %v1428
      %v1430 = vpop.f32.mrb[0].mxu0
      %1431 = vmatprep.mubr.bf16.mxu0 %v1079
      %1432 = vmatmul.mubr.bf16.gmra.mrb[0].mxu0 %v997
      %v1433 = vpop.f32.mrb[0].mxu0
      %v1434 = vadd.f32 %v1213, %v1433
      %v1435 = vpop.f32.mrb[0].mxu0
      %v1436 = vpop.f32.mrb[0].mxu0
      %v1437 = vadd.f32 %v1213, %v1436
      %v1438 = vpop.f32.mrb[0].mxu0
      %1439 = vmatprep.mubr.bf16.mxu0 %v1091
      %1440 = vmatmul.mubr.bf16.gmra.mrb[0].mxu0 %v998
      %v1441 = vpop.f32.mrb[0].mxu0
      %v1442 = vadd.f32 %v1213, %v1441
      %v1443 = vpop.f32.mrb[0].mxu0
      %v1444 = vpop.f32.mrb[0].mxu0
      %v1445 = vadd.f32 %v1213, %v1444
      %v1446 = vpop.f32.mrb[0].mxu0
      %1447 = vmatprep.mubr.bf16.mxu0 %v1103
      %1448 = vmatmul.mubr.bf16.gmra.mrb[0].mxu0 %v999
      %v1449 = vpop.f32.mrb[0].mxu0
      %v1450 = vadd.f32 %v1213, %v1449
      %v1451 = vpop.f32.mrb[0].mxu0
      %v1452 = vpop.f32.mrb[0].mxu0
      %v1453 = vadd.f32 %v1213, %v1452
      %v1454 = vpop.f32.mrb[0].mxu0
      %1455 = vdwg.mxu0
      %1456 = vmatprep.subr.bf16.mxu0 0
      %1457 = vmatpush1.bf16.msra.mxu0 %v1327
      %1458 = vmatprep.subr.bf16.mxu0 0
      %1459 = vmatpush1.bf16.msra.mxu0 %v1328
      %1460 = vmatprep.subr.bf16.mxu0 0
      %1461 = vmatpush1.bf16.msra.mxu0 %v1329
      %1462 = vmatprep.subr.bf16.mxu0 0
      %1463 = vmatpush1.bf16.msra.mxu0 %v1330
      %1464 = vmatprep.subr.bf16.mxu0 0
      %1465 = vmatpush1.bf16.msra.mxu0 %v1331
      %1466 = vmatprep.subr.bf16.mxu0 0
      %1467 = vmatpush1.bf16.msra.mxu0 %v1332
      %1468 = vmatprep.subr.bf16.mxu0 0
      %1469 = vmatpush1.bf16.msra.mxu0 %v1333
      %1470 = vmatprep.subr.bf16.mxu0 0
      %1471 = vmatpush1.bf16.msra.mxu0 %v1334
      %1472 = vmatprep.subr.bf16.mxu0 0
      %1473 = vmatpush1.bf16.msra.mxu0 0
      %1474 = vmatprep.subr.bf16.mxu0 0
      %1475 = vmatpush1.bf16.msra.mxu0 0
      %1476 = vmatprep.subr.bf16.mxu0 0
      %1477 = vmatpush1.bf16.msra.mxu0 0
      %1478 = vmatprep.subr.bf16.mxu0 0
      %1479 = vmatpush1.bf16.msra.mxu0 0
      %1480 = vmatprep.subr.bf16.mxu0 0
      %1481 = vmatpush1.bf16.msra.mxu0 0
      %1482 = vmatprep.subr.bf16.mxu0 0
      %1483 = vmatpush1.bf16.msra.mxu0 0
      %1484 = vmatprep.subr.bf16.mxu0 0
      %1485 = vmatpush1.bf16.msra.mxu0 0
      %1486 = vmatprep.subr.bf16.mxu0 0
      %1487 = vmatpush1.bf16.msra.mxu0 0
      %1488 = vmatprep.mubr.bf16.mxu0 0
      %1489 = vmatmul.mubr.bf16.gmra.mrb[0].mxu0 %v1130
      %v1490 = vpop.f32.mrb[0].mxu0
      %v1491 = vadd.f32 %v1394, %v1490
      %v1492 = vpop.f32.mrb[0].mxu0
      %v1493 = vpop.f32.mrb[0].mxu0
      %v1494 = vadd.f32 %v1397, %v1493
      %v1495 = vpop.f32.mrb[0].mxu0
      %1496 = vmatprep.mubr.bf16.mxu0 0
      %1497 = vmatmul.mubr.bf16.gmra.mrb[0].mxu0 %v1133
      %v1498 = vpop.f32.mrb[0].mxu0
      %v1499 = vadd.f32 %v1402, %v1498
      %v1500 = vpop.f32.mrb[0].mxu0
      %v1501 = vpop.f32.mrb[0].mxu0
      %v1502 = vadd.f32 %v1405, %v1501
      %v1503 = vpop.f32.mrb[0].mxu0
      %1504 = vmatprep.mubr.bf16.mxu0 0
      %1505 = vmatmul.mubr.bf16.gmra.mrb[0].mxu0 %v1136
      %v1506 = vpop.f32.mrb[0].mxu0
      %v1507 = vadd.f32 %v1410, %v1506
      %v1508 = vpop.f32.mrb[0].mxu0
      %v1509 = vpop.f32.mrb[0].mxu0
      %v1510 = vadd.f32 %v1413, %v1509
      %v1511 = vpop.f32.mrb[0].mxu0
      %1512 = vmatprep.mubr.bf16.mxu0 0
      %1513 = vmatmul.mubr.bf16.gmra.mrb[0].mxu0 %v1139
      %v1514 = vpop.f32.mrb[0].mxu0
      %v1515 = vadd.f32 %v1418, %v1514
      %v1516 = vpop.f32.mrb[0].mxu0
      %v1517 = vpop.f32.mrb[0].mxu0
      %v1518 = vadd.f32 %v1421, %v1517
      %v1519 = vpop.f32.mrb[0].mxu0
      %1520 = vmatprep.mubr.bf16.mxu0 0
      %1521 = vmatmul.mubr.bf16.gmra.mrb[0].mxu0 %v1142
      %v1522 = vpop.f32.mrb[0].mxu0
      %v1523 = vadd.f32 %v1426, %v1522
      %v1524 = vpop.f32.mrb[0].mxu0
      %v1525 = vpop.f32.mrb[0].mxu0
      %v1526 = vadd.f32 %v1429, %v1525
      %v1527 = vpop.f32.mrb[0].mxu0
      %1528 = vmatprep.mubr.bf16.mxu0 0
      %1529 = vmatmul.mubr.bf16.gmra.mrb[0].mxu0 %v1145
      %v1530 = vpop.f32.mrb[0].mxu0
      %v1531 = vadd.f32 %v1434, %v1530
      %v1532 = vpop.f32.mrb[0].mxu0
      %v1533 = vpop.f32.mrb[0].mxu0
      %v1534 = vadd.f32 %v1437, %v1533
      %v1535 = vpop.f32.mrb[0].mxu0
      %1536 = vmatprep.mubr.bf16.mxu0 0
      %1537 = vmatmul.mubr.bf16.gmra.mrb[0].mxu0 %v1148
      %v1538 = vpop.f32.mrb[0].mxu0
      %v1539 = vadd.f32 %v1442, %v1538
      %v1540 = vpop.f32.mrb[0].mxu0
      %v1541 = vpop.f32.mrb[0].mxu0
      %v1542 = vadd.f32 %v1445, %v1541
      %v1543 = vpop.f32.mrb[0].mxu0
      %1544 = vmatprep.mubr.bf16.mxu0 0
      %1545 = vmatmul.mubr.bf16.gmra.mrb[0].mxu0 %v1151
      %v1546 = vpop.f32.mrb[0].mxu0
      %v1547 = vadd.f32 %v1450, %v1546
      %v1548 = vpop.f32.mrb[0].mxu0
      %v1549 = vpop.f32.mrb[0].mxu0
      %v1550 = vadd.f32 %v1453, %v1549
      %v1551 = vpop.f32.mrb[0].mxu0
      %1552 = vdwg.mxu0
      %v1553 = vadd.f32 %v1491, %v234
      %v1554 = vadd.f32 %v1494, %v235
      %v1555 = vadd.f32 %v1499, %v236
      %v1556 = vadd.f32 %v1502, %v237
      %v1557 = vadd.f32 %v1507, %v238
      %v1558 = vadd.f32 %v1510, %v239
      %v1559 = vadd.f32 %v1515, %v240
      %v1560 = vadd.f32 %v1518, %v241
      %v1561 = vadd.f32 %v1523, %v242
      %v1562 = vadd.f32 %v1526, %v243
      %v1563 = vadd.f32 %v1531, %v244
      %v1564 = vadd.f32 %v1534, %v245
      %v1565 = vadd.f32 %v1539, %v246
      %v1566 = vadd.f32 %v1542, %v247
      %v1567 = vadd.f32 %v1547, %v248
      %v1568 = vadd.f32 %v1550, %v249
      %1569 = vst [vmem:[%s231] sm:$0xff] %v1553
      %1570 = vst [vmem:[%s231 + $0x8] sm:$0xff] %v1554
      %1571 = vst [vmem:[%s231 + $0x10] sm:$0xff] %v1555
      %1572 = vst [vmem:[%s231 + $0x18] sm:$0xff] %v1556
      %1573 = vst [vmem:[%s231 + $0x20] sm:$0xff] %v1557
      %1574 = vst [vmem:[%s231 + $0x28] sm:$0xff] %v1558
      %1575 = vst [vmem:[%s231 + $0x30] sm:$0xff] %v1559
      %1576 = vst [vmem:[%s231 + $0x38] sm:$0xff] %v1560
      %1577 = vst [vmem:[%s231 + $0x40] sm:$0xff] %v1561
      %1578 = vst [vmem:[%s231 + $0x48] sm:$0xff] %v1562
      %1579 = vst [vmem:[%s231 + $0x50] sm:$0xff] %v1563
      %1580 = vst [vmem:[%s231 + $0x58] sm:$0xff] %v1564
      %1581 = vst [vmem:[%s231 + $0x60] sm:$0xff] %v1565
      %1582 = vst [vmem:[%s231 + $0x68] sm:$0xff] %v1566
      %1583 = vst [vmem:[%s231 + $0x70] sm:$0xff] %v1567
      %1584 = vst [vmem:[%s231 + $0x78] sm:$0xff] %v1568
      %s1585 = smul.u32 8, %s16
      %p1586 = scmp.lt.s32.totalorder %s1585, 15
      %s1587 = scalar_select %p1586, %s1585, 15
      %s1588 = smul.addr %s1587, 2
      %s1589 = smul.addr %s1588, 8
      %s1590 = scalar_lea.vmem %s5, %s1589
      // Predicated region
      $region41: #{resblock_pallas.1} parent=39 // pred_check
        %p1591 = pneg %p144
      $region42: #{resblock_pallas.1} parent=39 // pred_check_branch
        %1593 = sbr.rel (%p1591) target = $region44
      $region43: #{resblock_pallas.1} parent=39 // pred_region
        %s1594 = smul.u32 8, %s16
      $region44: #{resblock_pallas.1} parent=39 // pred_fallthru
        _
    $region40: #{resblock_pallas.1} parent=5 // pred_fallthru
      _
    %p1595 = scmp.le.s32.totalorder 2, %s11
    // Predicated region
    $region45: #{resblock_pallas.1} parent=5 // pred_check
      %p1596 = pneg %p1595
    $region46: #{resblock_pallas.1} parent=5 // pred_check_branch
      %1598 = sbr.rel (%p1596) target = $region48
    $region47: #{resblock_pallas.1} parent=5 // pred_region
      %s1599 = ssub.s32 %s11, 2
      // Predicated region
      $region49: #{resblock_pallas.1} parent=47 // pred_check
        %p1600 = pneg %p150
      $region50: #{resblock_pallas.1} parent=47 // pred_check_branch
        %1602 = sbr.rel (%p1600) target = $region52
      $region51: #{resblock_pallas.1} parent=47 // pred_region
        %s1603 = smul.u32 8, %s17
        %p1604 = scmp.lt.s32.totalorder %s1603, 15
        %s1605 = scalar_select %p1604, %s1603, 15
        %s1606 = smul.addr %s1605, 2
        %s1607 = smul.addr %s1606, 8
        %s1608 = scalar_lea.vmem %s5, %s1607
      $region52: #{resblock_pallas.1} parent=47 // pred_fallthru
        _
    $region48: #{resblock_pallas.1} parent=5 // pred_fallthru
      _
  $region6: #{resblock_pallas.1} parent=0 // loop_footer
    %s15 = sadd.s32 1, %s11
  $region7: #{resblock_pallas.1} parent=0 // loop_footer_branch
    %10 = sbr.rel target = $region3
  $region8: #{resblock_pallas.1} parent=0 // loop_exit
    _

</llo_original>
